<compile_context>
chip_gen: v7x
topology: tpu7x:2x2x1
jax: 0.10.0
libtpu: 0.0.40
codegen_flags: <defaults>
</compile_context>

<pallas_src>
import functools

import jax
import jax.numpy as jnp
import numpy as np
from jax.experimental import pallas as pl
from jax.experimental.pallas import tpu as pltpu

SUBLANE = 8  # f32 sublane tile height


# ------------------------------ Fused kernel ----------------------------------
def _fused_rnn_imi_kernel(x_ref, w_all_ref, b_ref, wout_ref, y_ref,
                          *, T, Bp, D, H, O):
    """Fused 2-layer LSTM + Linear head, everything resident in VMEM/vregs.

    x_ref    : (T*Bp, D)   bf16  time-major input, batch padded to Bp=8
    w_all_ref: (D+3H, 4H)  bf16  [W0_ih^T ; W0_hh^T ; W1_ih^T ; W1_hh^T],
                                 g-gate columns pre-scaled by 2
    b_ref    : (3, 4H)     f32   [b0 folded ; b1 folded ; b_out zero-padded],
                                 g lanes of b0/b1 pre-scaled by 2
    wout_ref : (H, O)      f32
    y_ref    : (Bp, O)     f32
    """
    # Packed-weight split: static row slices, (16,128) bf16-tile aligned
    # because D and H are multiples of 16.
    w0ih = w_all_ref[0:D, :]                      # (D, 4H)
    w0hh = w_all_ref[D:D + H, :]                  # (H, 4H)
    w1 = w_all_ref[D + H:D + 3 * H, :]            # (2H, 4H) stacked layer-1

    b0 = b_ref[0:1, :]                            # (1, 4H)
    b1 = jnp.broadcast_to(b_ref[1:2, :], (Bp, 4 * H))   # hoisted broadcast
    bout = b_ref[2:3, :]                          # (1, 4H), head bias in [:O]

    # Hoisted layer-0 input projection for ALL timesteps: one bf16 MXU pass
    # + folded bias, instead of T tiny matmuls inside the recurrence.
    pre0 = jnp.dot(x_ref[...], w0ih, preferred_element_type=jnp.float32) + b0

    # Loop-invariant lane mask: lanes [2H, 3H) hold the 'g' gate.
    lane = jax.lax.broadcasted_iota(jnp.int32, (Bp, 4 * H), 1)
    is_g = (lane >= 2 * H) & (lane < 3 * H)

    def cell(gates, c):
        # Single EUP push per gate vector: sigmoid on the full (Bp, 4H) vreg.
        # g lanes were pre-scaled by 2 upstream, so tanh(z) = 2*sigmoid(2z)-1
        # is recovered with one VPU fma under the existing mask.
        s = jax.nn.sigmoid(gates)
        act = jnp.where(is_g, 2.0 * s - 1.0, s)
        i = act[:, 0 * H:1 * H]
        f = act[:, 1 * H:2 * H]
        g = act[:, 2 * H:3 * H]
        o = act[:, 3 * H:4 * H]
        c_new = f * c + i * g
        h_new = o * jnp.tanh(c_new)
        return h_new, c_new

    zeros = jnp.zeros((Bp, H), jnp.float32)
    h0, c0 = zeros, zeros
    h1, c1 = zeros, zeros

    # T is small and static: fully unrolled time loop, full LLO visibility
    # over the serial dependency chain.
    # TODO(synk): if T or H grow, switch to lax.fori_loop(unroll=True) over a
    # VMEM scratch holding pre0 shaped (T, Bp, 4H) to bound vreg pressure.
    for t in range(T):
        # Layer 0: only the recurrent matmul remains inside the loop.
        # The per-step slice is a whole (8,128)-aligned tile (Bp == 8).
        g0 = pre0[t * Bp:(t + 1) * Bp, :] + jnp.dot(
            h0.astype(jnp.bfloat16), w0hh, preferred_element_type=jnp.float32)
        h0, c0 = cell(g0, c0)

        # Layer 1: single fused MXU push — [h0 | h1] @ [W1_ih^T ; W1_hh^T].
        hcat = jnp.concatenate([h0, h1], axis=1).astype(jnp.bfloat16)  # (Bp, 2H)
        g1 = jnp.dot(hcat, w1, preferred_element_type=jnp.float32) + b1
        h1, c1 = cell(g1, c1)

    # Final Linear on the last timestep only — the single HBM write.  Kept in
    # f32 (off the recurrence critical path, trims accumulated bf16 error).
    y_ref[...] = (jnp.dot(h1, wout_ref[...], preferred_element_type=jnp.float32)
                  + bout[:, :O])


# --------------------- One-time parameter preprocessing ------------------------
def prepare_params(params, out_dim=9):
    """Hoist all transposes / stacking / bias folding / gate pre-scaling out of
    the per-call forward.  Returns packed, kernel-ready arrays."""
    H = params["w_hh_l0"].shape[1]
    D = params["w_ih_l0"].shape[1]
    assert D % 16 == 0 and H % 16 == 0, "bf16 tile-aligned packed-weight slices"
    assert 4 * H >= out_dim

    def scale_g_cols(w_t):  # (K, 4H): scale g-gate columns by 2 (exact in bf16)
        return w_t.at[:, 2 * H:3 * H].multiply(2.0)

    def scale_g_bias(b):    # (4H,)
        return b.at[2 * H:3 * H].multiply(2.0)

    w0ih_t = scale_g_cols(jnp.transpose(params["w_ih_l0"]))          # (D, 4H)
    w0hh_t = scale_g_cols(jnp.transpose(params["w_hh_l0"]))          # (H, 4H)
    w1_stk = scale_g_cols(jnp.concatenate(
        [jnp.transpose(params["w_ih_l1"]),
         jnp.transpose(params["w_hh_l1"])], axis=0))                 # (2H, 4H)
    # Single packed bf16 weight array -> one DMA into the kernel.
    w_all = jnp.concatenate([w0ih_t, w0hh_t, w1_stk],
                            axis=0).astype(jnp.bfloat16)             # (D+3H, 4H)

    b0 = scale_g_bias(params["b_ih_l0"] + params["b_hh_l0"])
    b1 = scale_g_bias(params["b_ih_l1"] + params["b_hh_l1"])
    bout = jnp.zeros((4 * H,), jnp.float32).at[:out_dim].set(params["b_out"])
    biases = jnp.stack([b0, b1, bout], axis=0).astype(jnp.float32)   # (3, 4H)

    wout_t = jnp.transpose(params["w_out"]).astype(jnp.float32)      # (H, out)

    return {"w_all": w_all, "biases": biases, "w_out_t": wout_t,
            "D": int(D), "H": int(H), "out_dim": int(out_dim)}


# ------------------------------ Module wrapper ---------------------------------
def rnn_imi_forward(prepped, x):
    """x: (B, T, n_features) -> y: (B, 1, 9). Fused single-kernel forward."""
    B, T, D = x.shape
    H, O = prepped["H"], prepped["out_dim"]
    assert D == prepped["D"]

    # Pad batch to one full sublane tile with zero rows (finite LSTM output on
    # the pad rows; sliced off below).
    Bp = max(SUBLANE, ((B + SUBLANE - 1) // SUBLANE) * SUBLANE)
    x_pad = jnp.zeros((Bp, T, D), jnp.float32).at[:B].set(x)
    # Time-major & flattened so the hoisted layer-0 projection is one matmul.
    x_flat = jnp.transpose(x_pad, (1, 0, 2)).reshape(T * Bp, D).astype(jnp.bfloat16)

    kernel = functools.partial(_fused_rnn_imi_kernel, T=T, Bp=Bp, D=D, H=H, O=O)
    vmem = pl.BlockSpec(memory_space=pltpu.MemorySpace.VMEM)
    # No grid: everything (<1 MiB) is VMEM-resident on v5e/v6e/v7x alike.
    # TODO(synk): for large batches on v7x, add a "parallel" batch grid axis so
    # the second TensorCore is used; pointless at B=2 (serial recurrence).
    y = pl.pallas_call(
        kernel,
        out_shape=jax.ShapeDtypeStruct((Bp, O), jnp.float32),
        in_specs=[vmem] * 4,
        out_specs=vmem,
    )(x_flat, prepped["w_all"], prepped["biases"], prepped["w_out_t"])
    return y[:B].reshape(-1, 1, O)


# ------------------------------ Parameter init ---------------------------------
def init_params(key, n_features, hidden_size, num_layers, out_dim=9):
    """Deterministic parameters with PyTorch-style U(-1/sqrt(H), 1/sqrt(H))."""
    params = {}
    bound = 1.0 / np.sqrt(hidden_size)
    for l in range(num_layers):
        d_in = n_features if l == 0 else hidden_size
        key, k1, k2, k3, k4 = jax.random.split(key, 5)
        params[f"w_ih_l{l}"] = jax.random.uniform(
            k1, (4 * hidden_size, d_in), jnp.float32, -bound, bound)
        params[f"w_hh_l{l}"] = jax.random.uniform(
            k2, (4 * hidden_size, hidden_size), jnp.float32, -bound, bound)
        params[f"b_ih_l{l}"] = jax.random.uniform(
            k3, (4 * hidden_size,), jnp.float32, -bound, bound)
        params[f"b_hh_l{l}"] = jax.random.uniform(
            k4, (4 * hidden_size,), jnp.float32, -bound, bound)
    key, k5, k6 = jax.random.split(key, 3)
    params["w_out"] = jax.random.uniform(
        k5, (out_dim, hidden_size), jnp.float32, -bound, bound)
    params["b_out"] = jax.random.uniform(
        k6, (out_dim,), jnp.float32, -bound, bound)
    return params


# ------------------------------ Pure-JAX reference -----------------------------
def _lstm_layer_ref(x_tbd, w_ih, w_hh, b_ih, b_hh):
    H = w_hh.shape[1]
    B = x_tbd.shape[1]
    b = b_ih + b_hh

    def step(carry, x_t):
        h, c = carry
        gates = x_t @ w_ih.T + h @ w_hh.T + b
        i = jax.nn.sigmoid(gates[:, 0 * H:1 * H])
        f = jax.nn.sigmoid(gates[:, 1 * H:2 * H])
        g = jnp.tanh(gates[:, 2 * H:3 * H])
        o = jax.nn.sigmoid(gates[:, 3 * H:4 * H])
        c = f * c + i * g
        h = o * jnp.tanh(c)
        return (h, c), h

    init = (jnp.zeros((B, H), jnp.float32), jnp.zeros((B, H), jnp.float32))
    _, hs = jax.lax.scan(step, init, x_tbd)
    return hs


def rnn_imi_forward_ref(params, x, num_layers=2, out_dim=9):
    h = jnp.transpose(x, (1, 0, 2))
    for l in range(num_layers):
        h = _lstm_layer_ref(h,
                            params[f"w_ih_l{l}"], params[f"w_hh_l{l}"],
                            params[f"b_ih_l{l}"], params[f"b_hh_l{l}"])
    y = h[-1] @ params["w_out"].T + params["b_out"]
    return y.reshape(-1, 1, out_dim)


# ----------------------------------- Main ---------------------------------------
if __name__ == "__main__":
    # Small shapes consistent with the module (n_features / hidden scaled down).
    B, T, D, H, L = 2, 8, 32, 32, 2

    key = jax.random.PRNGKey(0)
    key, kx, kp = jax.random.split(key, 3)
    x = jax.random.normal(kx, (B, T, D), jnp.float32)
    params = init_params(kp, n_features=D, hidden_size=H, num_layers=L)

    prepped = prepare_params(params)                       # one-time prep
    y = jax.block_until_ready(rnn_imi_forward(prepped, x))
    y_ref = jax.block_until_ready(rnn_imi_forward_ref(params, x, num_layers=L))

    assert y.shape == (B, 1, 9), y.shape
    # Tolerance reflects bf16 MXU operands (f32 accumulation) across the
    # 2-layer, 8-step recurrence vs. the pure-f32 reference.
    np.testing.assert_allclose(np.asarray(y), np.asarray(y_ref),
                               rtol=2e-2, atol=2e-2)

    print("KERNEL_OK")
</pallas_src>

<mosaic_0001>
module attributes {stable_mosaic.version = 11 : i64} {
  func.func @_fused_rnn_imi_kernel(%arg0: memref<64x32xbf16, #tpu.memory_space<vmem>>, %arg1: memref<128x128xbf16, #tpu.memory_space<vmem>>, %arg2: memref<3x128xf32, #tpu.memory_space<vmem>>, %arg3: memref<32x9xf32, #tpu.memory_space<vmem>>, %arg4: memref<8x9xf32, #tpu.memory_space<vmem>>) attributes {dimension_semantics = [], scalar_prefetch = 0 : i64, scratch_operands = 0 : i64, tpu.core_type = #tpu.core_type<tc>} {
    %c0 = arith.constant 0 : index
    %c0_0 = arith.constant 0 : index
    %0 = vector.load %arg1[%c0, %c0_0] : memref<128x128xbf16, #tpu.memory_space<vmem>>, vector<32x128xbf16>
    %c32 = arith.constant 32 : index
    %c0_1 = arith.constant 0 : index
    %1 = vector.load %arg1[%c32, %c0_1] : memref<128x128xbf16, #tpu.memory_space<vmem>>, vector<32x128xbf16>
    %c64 = arith.constant 64 : index
    %c0_2 = arith.constant 0 : index
    %2 = vector.load %arg1[%c64, %c0_2] : memref<128x128xbf16, #tpu.memory_space<vmem>>, vector<64x128xbf16>
    %c0_3 = arith.constant 0 : index
    %c0_4 = arith.constant 0 : index
    %3 = vector.load %arg2[%c0_3, %c0_4] : memref<3x128xf32, #tpu.memory_space<vmem>>, vector<1x128xf32>
    %c1 = arith.constant 1 : index
    %c0_5 = arith.constant 0 : index
    %4 = vector.load %arg2[%c1, %c0_5] : memref<3x128xf32, #tpu.memory_space<vmem>>, vector<1x128xf32>
    %5 = vector.shape_cast %4 : vector<1x128xf32> to vector<1x128xf32>
    %6 = vector.broadcast %5 : vector<1x128xf32> to vector<8x128xf32>
    %c2 = arith.constant 2 : index
    %c0_6 = arith.constant 0 : index
    %7 = vector.load %arg2[%c2, %c0_6] : memref<3x128xf32, #tpu.memory_space<vmem>>, vector<1x128xf32>
    %c0_7 = arith.constant 0 : index
    %c0_8 = arith.constant 0 : index
    %8 = vector.load %arg0[%c0_7, %c0_8] : memref<64x32xbf16, #tpu.memory_space<vmem>>, vector<64x32xbf16>
    %cst = arith.constant dense<0.000000e+00> : vector<64x128xf32>
    %9 = tpu.matmul %8, %0, %cst {dimension_numbers = #tpu.dot_dimension_numbers<[1], [0], [0], [1], [0, 0, 1, 1], [], []>} : vector<64x32xbf16>, vector<32x128xbf16>, vector<64x128xf32> -> vector<64x128xf32>
    %10 = vector.broadcast %3 : vector<1x128xf32> to vector<64x128xf32>
    %11 = arith.addf %9, %10 : vector<64x128xf32>
    %12 = tpu.iota {dimensions = array<i32: 1>} : vector<8x128xi32>
    %c64_i32 = arith.constant 64 : i32
    %13 = vector.broadcast %c64_i32 : i32 to vector<8x128xi32>
    %14 = arith.cmpi sge, %12, %13 : vector<8x128xi32>
    %c96_i32 = arith.constant 96 : i32
    %15 = vector.broadcast %c96_i32 : i32 to vector<8x128xi32>
    %16 = arith.cmpi slt, %12, %15 : vector<8x128xi32>
    %17 = arith.andi %14, %16 : vector<8x128xi1>
    %cst_9 = arith.constant 0.000000e+00 : f32
    %18 = vector.broadcast %cst_9 : f32 to vector<8x32xf32>
    %19 = vector.extract_strided_slice %11 {offsets = [0, 0], sizes = [8, 128], strides = [1, 1]} : vector<64x128xf32> to vector<8x128xf32>
    %20 = arith.truncf %18 : vector<8x32xf32> to vector<8x32xbf16>
    %cst_10 = arith.constant dense<0.000000e+00> : vector<8x128xf32>
    %21 = tpu.matmul %20, %1, %cst_10 {dimension_numbers = #tpu.dot_dimension_numbers<[1], [0], [0], [1], [0, 0, 1, 1], [], []>} : vector<8x32xbf16>, vector<32x128xbf16>, vector<8x128xf32> -> vector<8x128xf32>
    %22 = arith.addf %19, %21 : vector<8x128xf32>
    %23 = arith.negf %22 : vector<8x128xf32>
    %24 = math.exp %23 : vector<8x128xf32>
    %cst_11 = arith.constant 1.000000e+00 : f32
    %25 = vector.broadcast %cst_11 : f32 to vector<8x128xf32>
    %26 = arith.addf %25, %24 : vector<8x128xf32>
    %27 = arith.divf %25, %26 : vector<8x128xf32>
    %cst_12 = arith.constant 2.000000e+00 : f32
    %28 = vector.broadcast %cst_12 : f32 to vector<8x128xf32>
    %29 = arith.mulf %28, %27 : vector<8x128xf32>
    %cst_13 = arith.constant 1.000000e+00 : f32
    %30 = vector.broadcast %cst_13 : f32 to vector<8x128xf32>
    %31 = arith.subf %29, %30 : vector<8x128xf32>
    %32 = arith.select %17, %31, %27 : vector<8x128xi1>, vector<8x128xf32>
    %33 = vector.extract_strided_slice %32 {offsets = [0, 0], sizes = [8, 32], strides = [1, 1]} : vector<8x128xf32> to vector<8x32xf32>
    %34 = vector.extract_strided_slice %32 {offsets = [0, 32], sizes = [8, 32], strides = [1, 1]} : vector<8x128xf32> to vector<8x32xf32>
    %35 = vector.extract_strided_slice %32 {offsets = [0, 64], sizes = [8, 32], strides = [1, 1]} : vector<8x128xf32> to vector<8x32xf32>
    %36 = vector.extract_strided_slice %32 {offsets = [0, 96], sizes = [8, 32], strides = [1, 1]} : vector<8x128xf32> to vector<8x32xf32>
    %37 = arith.mulf %34, %18 : vector<8x32xf32>
    %38 = arith.mulf %33, %35 : vector<8x32xf32>
    %39 = arith.addf %37, %38 : vector<8x32xf32>
    %40 = math.tanh %39 : vector<8x32xf32>
    %41 = arith.mulf %36, %40 : vector<8x32xf32>
    %42 = tpu.concatenate %41, %18 in 1 : vector<8x32xf32>, vector<8x32xf32> -> vector<8x64xf32>
    %43 = arith.truncf %42 : vector<8x64xf32> to vector<8x64xbf16>
    %cst_14 = arith.constant dense<0.000000e+00> : vector<8x128xf32>
    %44 = tpu.matmul %43, %2, %cst_14 {dimension_numbers = #tpu.dot_dimension_numbers<[1], [0], [0], [1], [0, 0, 1, 1], [], []>} : vector<8x64xbf16>, vector<64x128xbf16>, vector<8x128xf32> -> vector<8x128xf32>
    %45 = arith.addf %44, %6 : vector<8x128xf32>
    %46 = arith.negf %45 : vector<8x128xf32>
    %47 = math.exp %46 : vector<8x128xf32>
    %cst_15 = arith.constant 1.000000e+00 : f32
    %48 = vector.broadcast %cst_15 : f32 to vector<8x128xf32>
    %49 = arith.addf %48, %47 : vector<8x128xf32>
    %50 = arith.divf %48, %49 : vector<8x128xf32>
    %cst_16 = arith.constant 2.000000e+00 : f32
    %51 = vector.broadcast %cst_16 : f32 to vector<8x128xf32>
    %52 = arith.mulf %51, %50 : vector<8x128xf32>
    %cst_17 = arith.constant 1.000000e+00 : f32
    %53 = vector.broadcast %cst_17 : f32 to vector<8x128xf32>
    %54 = arith.subf %52, %53 : vector<8x128xf32>
    %55 = arith.select %17, %54, %50 : vector<8x128xi1>, vector<8x128xf32>
    %56 = vector.extract_strided_slice %55 {offsets = [0, 0], sizes = [8, 32], strides = [1, 1]} : vector<8x128xf32> to vector<8x32xf32>
    %57 = vector.extract_strided_slice %55 {offsets = [0, 32], sizes = [8, 32], strides = [1, 1]} : vector<8x128xf32> to vector<8x32xf32>
    %58 = vector.extract_strided_slice %55 {offsets = [0, 64], sizes = [8, 32], strides = [1, 1]} : vector<8x128xf32> to vector<8x32xf32>
    %59 = vector.extract_strided_slice %55 {offsets = [0, 96], sizes = [8, 32], strides = [1, 1]} : vector<8x128xf32> to vector<8x32xf32>
    %60 = arith.mulf %57, %18 : vector<8x32xf32>
    %61 = arith.mulf %56, %58 : vector<8x32xf32>
    %62 = arith.addf %60, %61 : vector<8x32xf32>
    %63 = math.tanh %62 : vector<8x32xf32>
    %64 = arith.mulf %59, %63 : vector<8x32xf32>
    %65 = vector.extract_strided_slice %11 {offsets = [8, 0], sizes = [8, 128], strides = [1, 1]} : vector<64x128xf32> to vector<8x128xf32>
    %66 = arith.truncf %41 : vector<8x32xf32> to vector<8x32xbf16>
    %cst_18 = arith.constant dense<0.000000e+00> : vector<8x128xf32>
    %67 = tpu.matmul %66, %1, %cst_18 {dimension_numbers = #tpu.dot_dimension_numbers<[1], [0], [0], [1], [0, 0, 1, 1], [], []>} : vector<8x32xbf16>, vector<32x128xbf16>, vector<8x128xf32> -> vector<8x128xf32>
    %68 = arith.addf %65, %67 : vector<8x128xf32>
    %69 = arith.negf %68 : vector<8x128xf32>
    %70 = math.exp %69 : vector<8x128xf32>
    %cst_19 = arith.constant 1.000000e+00 : f32
    %71 = vector.broadcast %cst_19 : f32 to vector<8x128xf32>
    %72 = arith.addf %71, %70 : vector<8x128xf32>
    %73 = arith.divf %71, %72 : vector<8x128xf32>
    %cst_20 = arith.constant 2.000000e+00 : f32
    %74 = vector.broadcast %cst_20 : f32 to vector<8x128xf32>
    %75 = arith.mulf %74, %73 : vector<8x128xf32>
    %cst_21 = arith.constant 1.000000e+00 : f32
    %76 = vector.broadcast %cst_21 : f32 to vector<8x128xf32>
    %77 = arith.subf %75, %76 : vector<8x128xf32>
    %78 = arith.select %17, %77, %73 : vector<8x128xi1>, vector<8x128xf32>
    %79 = vector.extract_strided_slice %78 {offsets = [0, 0], sizes = [8, 32], strides = [1, 1]} : vector<8x128xf32> to vector<8x32xf32>
    %80 = vector.extract_strided_slice %78 {offsets = [0, 32], sizes = [8, 32], strides = [1, 1]} : vector<8x128xf32> to vector<8x32xf32>
    %81 = vector.extract_strided_slice %78 {offsets = [0, 64], sizes = [8, 32], strides = [1, 1]} : vector<8x128xf32> to vector<8x32xf32>
    %82 = vector.extract_strided_slice %78 {offsets = [0, 96], sizes = [8, 32], strides = [1, 1]} : vector<8x128xf32> to vector<8x32xf32>
    %83 = arith.mulf %80, %39 : vector<8x32xf32>
    %84 = arith.mulf %79, %81 : vector<8x32xf32>
    %85 = arith.addf %83, %84 : vector<8x32xf32>
    %86 = math.tanh %85 : vector<8x32xf32>
    %87 = arith.mulf %82, %86 : vector<8x32xf32>
    %88 = tpu.concatenate %87, %64 in 1 : vector<8x32xf32>, vector<8x32xf32> -> vector<8x64xf32>
    %89 = arith.truncf %88 : vector<8x64xf32> to vector<8x64xbf16>
    %cst_22 = arith.constant dense<0.000000e+00> : vector<8x128xf32>
    %90 = tpu.matmul %89, %2, %cst_22 {dimension_numbers = #tpu.dot_dimension_numbers<[1], [0], [0], [1], [0, 0, 1, 1], [], []>} : vector<8x64xbf16>, vector<64x128xbf16>, vector<8x128xf32> -> vector<8x128xf32>
    %91 = arith.addf %90, %6 : vector<8x128xf32>
    %92 = arith.negf %91 : vector<8x128xf32>
    %93 = math.exp %92 : vector<8x128xf32>
    %cst_23 = arith.constant 1.000000e+00 : f32
    %94 = vector.broadcast %cst_23 : f32 to vector<8x128xf32>
    %95 = arith.addf %94, %93 : vector<8x128xf32>
    %96 = arith.divf %94, %95 : vector<8x128xf32>
    %cst_24 = arith.constant 2.000000e+00 : f32
    %97 = vector.broadcast %cst_24 : f32 to vector<8x128xf32>
    %98 = arith.mulf %97, %96 : vector<8x128xf32>
    %cst_25 = arith.constant 1.000000e+00 : f32
    %99 = vector.broadcast %cst_25 : f32 to vector<8x128xf32>
    %100 = arith.subf %98, %99 : vector<8x128xf32>
    %101 = arith.select %17, %100, %96 : vector<8x128xi1>, vector<8x128xf32>
    %102 = vector.extract_strided_slice %101 {offsets = [0, 0], sizes = [8, 32], strides = [1, 1]} : vector<8x128xf32> to vector<8x32xf32>
    %103 = vector.extract_strided_slice %101 {offsets = [0, 32], sizes = [8, 32], strides = [1, 1]} : vector<8x128xf32> to vector<8x32xf32>
    %104 = vector.extract_strided_slice %101 {offsets = [0, 64], sizes = [8, 32], strides = [1, 1]} : vector<8x128xf32> to vector<8x32xf32>
    %105 = vector.extract_strided_slice %101 {offsets = [0, 96], sizes = [8, 32], strides = [1, 1]} : vector<8x128xf32> to vector<8x32xf32>
    %106 = arith.mulf %103, %62 : vector<8x32xf32>
    %107 = arith.mulf %102, %104 : vector<8x32xf32>
    %108 = arith.addf %106, %107 : vector<8x32xf32>
    %109 = math.tanh %108 : vector<8x32xf32>
    %110 = arith.mulf %105, %109 : vector<8x32xf32>
    %111 = vector.extract_strided_slice %11 {offsets = [16, 0], sizes = [8, 128], strides = [1, 1]} : vector<64x128xf32> to vector<8x128xf32>
    %112 = arith.truncf %87 : vector<8x32xf32> to vector<8x32xbf16>
    %cst_26 = arith.constant dense<0.000000e+00> : vector<8x128xf32>
    %113 = tpu.matmul %112, %1, %cst_26 {dimension_numbers = #tpu.dot_dimension_numbers<[1], [0], [0], [1], [0, 0, 1, 1], [], []>} : vector<8x32xbf16>, vector<32x128xbf16>, vector<8x128xf32> -> vector<8x128xf32>
    %114 = arith.addf %111, %113 : vector<8x128xf32>
    %115 = arith.negf %114 : vector<8x128xf32>
    %116 = math.exp %115 : vector<8x128xf32>
    %cst_27 = arith.constant 1.000000e+00 : f32
    %117 = vector.broadcast %cst_27 : f32 to vector<8x128xf32>
    %118 = arith.addf %117, %116 : vector<8x128xf32>
    %119 = arith.divf %117, %118 : vector<8x128xf32>
    %cst_28 = arith.constant 2.000000e+00 : f32
    %120 = vector.broadcast %cst_28 : f32 to vector<8x128xf32>
    %121 = arith.mulf %120, %119 : vector<8x128xf32>
    %cst_29 = arith.constant 1.000000e+00 : f32
    %122 = vector.broadcast %cst_29 : f32 to vector<8x128xf32>
    %123 = arith.subf %121, %122 : vector<8x128xf32>
    %124 = arith.select %17, %123, %119 : vector<8x128xi1>, vector<8x128xf32>
    %125 = vector.extract_strided_slice %124 {offsets = [0, 0], sizes = [8, 32], strides = [1, 1]} : vector<8x128xf32> to vector<8x32xf32>
    %126 = vector.extract_strided_slice %124 {offsets = [0, 32], sizes = [8, 32], strides = [1, 1]} : vector<8x128xf32> to vector<8x32xf32>
    %127 = vector.extract_strided_slice %124 {offsets = [0, 64], sizes = [8, 32], strides = [1, 1]} : vector<8x128xf32> to vector<8x32xf32>
    %128 = vector.extract_strided_slice %124 {offsets = [0, 96], sizes = [8, 32], strides = [1, 1]} : vector<8x128xf32> to vector<8x32xf32>
    %129 = arith.mulf %126, %85 : vector<8x32xf32>
    %130 = arith.mulf %125, %127 : vector<8x32xf32>
    %131 = arith.addf %129, %130 : vector<8x32xf32>
    %132 = math.tanh %131 : vector<8x32xf32>
    %133 = arith.mulf %128, %132 : vector<8x32xf32>
    %134 = tpu.concatenate %133, %110 in 1 : vector<8x32xf32>, vector<8x32xf32> -> vector<8x64xf32>
    %135 = arith.truncf %134 : vector<8x64xf32> to vector<8x64xbf16>
    %cst_30 = arith.constant dense<0.000000e+00> : vector<8x128xf32>
    %136 = tpu.matmul %135, %2, %cst_30 {dimension_numbers = #tpu.dot_dimension_numbers<[1], [0], [0], [1], [0, 0, 1, 1], [], []>} : vector<8x64xbf16>, vector<64x128xbf16>, vector<8x128xf32> -> vector<8x128xf32>
    %137 = arith.addf %136, %6 : vector<8x128xf32>
    %138 = arith.negf %137 : vector<8x128xf32>
    %139 = math.exp %138 : vector<8x128xf32>
    %cst_31 = arith.constant 1.000000e+00 : f32
    %140 = vector.broadcast %cst_31 : f32 to vector<8x128xf32>
    %141 = arith.addf %140, %139 : vector<8x128xf32>
    %142 = arith.divf %140, %141 : vector<8x128xf32>
    %cst_32 = arith.constant 2.000000e+00 : f32
    %143 = vector.broadcast %cst_32 : f32 to vector<8x128xf32>
    %144 = arith.mulf %143, %142 : vector<8x128xf32>
    %cst_33 = arith.constant 1.000000e+00 : f32
    %145 = vector.broadcast %cst_33 : f32 to vector<8x128xf32>
    %146 = arith.subf %144, %145 : vector<8x128xf32>
    %147 = arith.select %17, %146, %142 : vector<8x128xi1>, vector<8x128xf32>
    %148 = vector.extract_strided_slice %147 {offsets = [0, 0], sizes = [8, 32], strides = [1, 1]} : vector<8x128xf32> to vector<8x32xf32>
    %149 = vector.extract_strided_slice %147 {offsets = [0, 32], sizes = [8, 32], strides = [1, 1]} : vector<8x128xf32> to vector<8x32xf32>
    %150 = vector.extract_strided_slice %147 {offsets = [0, 64], sizes = [8, 32], strides = [1, 1]} : vector<8x128xf32> to vector<8x32xf32>
    %151 = vector.extract_strided_slice %147 {offsets = [0, 96], sizes = [8, 32], strides = [1, 1]} : vector<8x128xf32> to vector<8x32xf32>
    %152 = arith.mulf %149, %108 : vector<8x32xf32>
    %153 = arith.mulf %148, %150 : vector<8x32xf32>
    %154 = arith.addf %152, %153 : vector<8x32xf32>
    %155 = math.tanh %154 : vector<8x32xf32>
    %156 = arith.mulf %151, %155 : vector<8x32xf32>
    %157 = vector.extract_strided_slice %11 {offsets = [24, 0], sizes = [8, 128], strides = [1, 1]} : vector<64x128xf32> to vector<8x128xf32>
    %158 = arith.truncf %133 : vector<8x32xf32> to vector<8x32xbf16>
    %cst_34 = arith.constant dense<0.000000e+00> : vector<8x128xf32>
    %159 = tpu.matmul %158, %1, %cst_34 {dimension_numbers = #tpu.dot_dimension_numbers<[1], [0], [0], [1], [0, 0, 1, 1], [], []>} : vector<8x32xbf16>, vector<32x128xbf16>, vector<8x128xf32> -> vector<8x128xf32>
    %160 = arith.addf %157, %159 : vector<8x128xf32>
    %161 = arith.negf %160 : vector<8x128xf32>
    %162 = math.exp %161 : vector<8x128xf32>
    %cst_35 = arith.constant 1.000000e+00 : f32
    %163 = vector.broadcast %cst_35 : f32 to vector<8x128xf32>
    %164 = arith.addf %163, %162 : vector<8x128xf32>
    %165 = arith.divf %163, %164 : vector<8x128xf32>
    %cst_36 = arith.constant 2.000000e+00 : f32
    %166 = vector.broadcast %cst_36 : f32 to vector<8x128xf32>
    %167 = arith.mulf %166, %165 : vector<8x128xf32>
    %cst_37 = arith.constant 1.000000e+00 : f32
    %168 = vector.broadcast %cst_37 : f32 to vector<8x128xf32>
    %169 = arith.subf %167, %168 : vector<8x128xf32>
    %170 = arith.select %17, %169, %165 : vector<8x128xi1>, vector<8x128xf32>
    %171 = vector.extract_strided_slice %170 {offsets = [0, 0], sizes = [8, 32], strides = [1, 1]} : vector<8x128xf32> to vector<8x32xf32>
    %172 = vector.extract_strided_slice %170 {offsets = [0, 32], sizes = [8, 32], strides = [1, 1]} : vector<8x128xf32> to vector<8x32xf32>
    %173 = vector.extract_strided_slice %170 {offsets = [0, 64], sizes = [8, 32], strides = [1, 1]} : vector<8x128xf32> to vector<8x32xf32>
    %174 = vector.extract_strided_slice %170 {offsets = [0, 96], sizes = [8, 32], strides = [1, 1]} : vector<8x128xf32> to vector<8x32xf32>
    %175 = arith.mulf %172, %131 : vector<8x32xf32>
    %176 = arith.mulf %171, %173 : vector<8x32xf32>
    %177 = arith.addf %175, %176 : vector<8x32xf32>
    %178 = math.tanh %177 : vector<8x32xf32>
    %179 = arith.mulf %174, %178 : vector<8x32xf32>
    %180 = tpu.concatenate %179, %156 in 1 : vector<8x32xf32>, vector<8x32xf32> -> vector<8x64xf32>
    %181 = arith.truncf %180 : vector<8x64xf32> to vector<8x64xbf16>
    %cst_38 = arith.constant dense<0.000000e+00> : vector<8x128xf32>
    %182 = tpu.matmul %181, %2, %cst_38 {dimension_numbers = #tpu.dot_dimension_numbers<[1], [0], [0], [1], [0, 0, 1, 1], [], []>} : vector<8x64xbf16>, vector<64x128xbf16>, vector<8x128xf32> -> vector<8x128xf32>
    %183 = arith.addf %182, %6 : vector<8x128xf32>
    %184 = arith.negf %183 : vector<8x128xf32>
    %185 = math.exp %184 : vector<8x128xf32>
    %cst_39 = arith.constant 1.000000e+00 : f32
    %186 = vector.broadcast %cst_39 : f32 to vector<8x128xf32>
    %187 = arith.addf %186, %185 : vector<8x128xf32>
    %188 = arith.divf %186, %187 : vector<8x128xf32>
    %cst_40 = arith.constant 2.000000e+00 : f32
    %189 = vector.broadcast %cst_40 : f32 to vector<8x128xf32>
    %190 = arith.mulf %189, %188 : vector<8x128xf32>
    %cst_41 = arith.constant 1.000000e+00 : f32
    %191 = vector.broadcast %cst_41 : f32 to vector<8x128xf32>
    %192 = arith.subf %190, %191 : vector<8x128xf32>
    %193 = arith.select %17, %192, %188 : vector<8x128xi1>, vector<8x128xf32>
    %194 = vector.extract_strided_slice %193 {offsets = [0, 0], sizes = [8, 32], strides = [1, 1]} : vector<8x128xf32> to vector<8x32xf32>
    %195 = vector.extract_strided_slice %193 {offsets = [0, 32], sizes = [8, 32], strides = [1, 1]} : vector<8x128xf32> to vector<8x32xf32>
    %196 = vector.extract_strided_slice %193 {offsets = [0, 64], sizes = [8, 32], strides = [1, 1]} : vector<8x128xf32> to vector<8x32xf32>
    %197 = vector.extract_strided_slice %193 {offsets = [0, 96], sizes = [8, 32], strides = [1, 1]} : vector<8x128xf32> to vector<8x32xf32>
    %198 = arith.mulf %195, %154 : vector<8x32xf32>
    %199 = arith.mulf %194, %196 : vector<8x32xf32>
    %200 = arith.addf %198, %199 : vector<8x32xf32>
    %201 = math.tanh %200 : vector<8x32xf32>
    %202 = arith.mulf %197, %201 : vector<8x32xf32>
    %203 = vector.extract_strided_slice %11 {offsets = [32, 0], sizes = [8, 128], strides = [1, 1]} : vector<64x128xf32> to vector<8x128xf32>
    %204 = arith.truncf %179 : vector<8x32xf32> to vector<8x32xbf16>
    %cst_42 = arith.constant dense<0.000000e+00> : vector<8x128xf32>
    %205 = tpu.matmul %204, %1, %cst_42 {dimension_numbers = #tpu.dot_dimension_numbers<[1], [0], [0], [1], [0, 0, 1, 1], [], []>} : vector<8x32xbf16>, vector<32x128xbf16>, vector<8x128xf32> -> vector<8x128xf32>
    %206 = arith.addf %203, %205 : vector<8x128xf32>
    %207 = arith.negf %206 : vector<8x128xf32>
    %208 = math.exp %207 : vector<8x128xf32>
    %cst_43 = arith.constant 1.000000e+00 : f32
    %209 = vector.broadcast %cst_43 : f32 to vector<8x128xf32>
    %210 = arith.addf %209, %208 : vector<8x128xf32>
    %211 = arith.divf %209, %210 : vector<8x128xf32>
    %cst_44 = arith.constant 2.000000e+00 : f32
    %212 = vector.broadcast %cst_44 : f32 to vector<8x128xf32>
    %213 = arith.mulf %212, %211 : vector<8x128xf32>
    %cst_45 = arith.constant 1.000000e+00 : f32
    %214 = vector.broadcast %cst_45 : f32 to vector<8x128xf32>
    %215 = arith.subf %213, %214 : vector<8x128xf32>
    %216 = arith.select %17, %215, %211 : vector<8x128xi1>, vector<8x128xf32>
    %217 = vector.extract_strided_slice %216 {offsets = [0, 0], sizes = [8, 32], strides = [1, 1]} : vector<8x128xf32> to vector<8x32xf32>
    %218 = vector.extract_strided_slice %216 {offsets = [0, 32], sizes = [8, 32], strides = [1, 1]} : vector<8x128xf32> to vector<8x32xf32>
    %219 = vector.extract_strided_slice %216 {offsets = [0, 64], sizes = [8, 32], strides = [1, 1]} : vector<8x128xf32> to vector<8x32xf32>
    %220 = vector.extract_strided_slice %216 {offsets = [0, 96], sizes = [8, 32], strides = [1, 1]} : vector<8x128xf32> to vector<8x32xf32>
    %221 = arith.mulf %218, %177 : vector<8x32xf32>
    %222 = arith.mulf %217, %219 : vector<8x32xf32>
    %223 = arith.addf %221, %222 : vector<8x32xf32>
    %224 = math.tanh %223 : vector<8x32xf32>
    %225 = arith.mulf %220, %224 : vector<8x32xf32>
    %226 = tpu.concatenate %225, %202 in 1 : vector<8x32xf32>, vector<8x32xf32> -> vector<8x64xf32>
    %227 = arith.truncf %226 : vector<8x64xf32> to vector<8x64xbf16>
    %cst_46 = arith.constant dense<0.000000e+00> : vector<8x128xf32>
    %228 = tpu.matmul %227, %2, %cst_46 {dimension_numbers = #tpu.dot_dimension_numbers<[1], [0], [0], [1], [0, 0, 1, 1], [], []>} : vector<8x64xbf16>, vector<64x128xbf16>, vector<8x128xf32> -> vector<8x128xf32>
    %229 = arith.addf %228, %6 : vector<8x128xf32>
    %230 = arith.negf %229 : vector<8x128xf32>
    %231 = math.exp %230 : vector<8x128xf32>
    %cst_47 = arith.constant 1.000000e+00 : f32
    %232 = vector.broadcast %cst_47 : f32 to vector<8x128xf32>
    %233 = arith.addf %232, %231 : vector<8x128xf32>
    %234 = arith.divf %232, %233 : vector<8x128xf32>
    %cst_48 = arith.constant 2.000000e+00 : f32
    %235 = vector.broadcast %cst_48 : f32 to vector<8x128xf32>
    %236 = arith.mulf %235, %234 : vector<8x128xf32>
    %cst_49 = arith.constant 1.000000e+00 : f32
    %237 = vector.broadcast %cst_49 : f32 to vector<8x128xf32>
    %238 = arith.subf %236, %237 : vector<8x128xf32>
    %239 = arith.select %17, %238, %234 : vector<8x128xi1>, vector<8x128xf32>
    %240 = vector.extract_strided_slice %239 {offsets = [0, 0], sizes = [8, 32], strides = [1, 1]} : vector<8x128xf32> to vector<8x32xf32>
    %241 = vector.extract_strided_slice %239 {offsets = [0, 32], sizes = [8, 32], strides = [1, 1]} : vector<8x128xf32> to vector<8x32xf32>
    %242 = vector.extract_strided_slice %239 {offsets = [0, 64], sizes = [8, 32], strides = [1, 1]} : vector<8x128xf32> to vector<8x32xf32>
    %243 = vector.extract_strided_slice %239 {offsets = [0, 96], sizes = [8, 32], strides = [1, 1]} : vector<8x128xf32> to vector<8x32xf32>
    %244 = arith.mulf %241, %200 : vector<8x32xf32>
    %245 = arith.mulf %240, %242 : vector<8x32xf32>
    %246 = arith.addf %244, %245 : vector<8x32xf32>
    %247 = math.tanh %246 : vector<8x32xf32>
    %248 = arith.mulf %243, %247 : vector<8x32xf32>
    %249 = vector.extract_strided_slice %11 {offsets = [40, 0], sizes = [8, 128], strides = [1, 1]} : vector<64x128xf32> to vector<8x128xf32>
    %250 = arith.truncf %225 : vector<8x32xf32> to vector<8x32xbf16>
    %cst_50 = arith.constant dense<0.000000e+00> : vector<8x128xf32>
    %251 = tpu.matmul %250, %1, %cst_50 {dimension_numbers = #tpu.dot_dimension_numbers<[1], [0], [0], [1], [0, 0, 1, 1], [], []>} : vector<8x32xbf16>, vector<32x128xbf16>, vector<8x128xf32> -> vector<8x128xf32>
    %252 = arith.addf %249, %251 : vector<8x128xf32>
    %253 = arith.negf %252 : vector<8x128xf32>
    %254 = math.exp %253 : vector<8x128xf32>
    %cst_51 = arith.constant 1.000000e+00 : f32
    %255 = vector.broadcast %cst_51 : f32 to vector<8x128xf32>
    %256 = arith.addf %255, %254 : vector<8x128xf32>
    %257 = arith.divf %255, %256 : vector<8x128xf32>
    %cst_52 = arith.constant 2.000000e+00 : f32
    %258 = vector.broadcast %cst_52 : f32 to vector<8x128xf32>
    %259 = arith.mulf %258, %257 : vector<8x128xf32>
    %cst_53 = arith.constant 1.000000e+00 : f32
    %260 = vector.broadcast %cst_53 : f32 to vector<8x128xf32>
    %261 = arith.subf %259, %260 : vector<8x128xf32>
    %262 = arith.select %17, %261, %257 : vector<8x128xi1>, vector<8x128xf32>
    %263 = vector.extract_strided_slice %262 {offsets = [0, 0], sizes = [8, 32], strides = [1, 1]} : vector<8x128xf32> to vector<8x32xf32>
    %264 = vector.extract_strided_slice %262 {offsets = [0, 32], sizes = [8, 32], strides = [1, 1]} : vector<8x128xf32> to vector<8x32xf32>
    %265 = vector.extract_strided_slice %262 {offsets = [0, 64], sizes = [8, 32], strides = [1, 1]} : vector<8x128xf32> to vector<8x32xf32>
    %266 = vector.extract_strided_slice %262 {offsets = [0, 96], sizes = [8, 32], strides = [1, 1]} : vector<8x128xf32> to vector<8x32xf32>
    %267 = arith.mulf %264, %223 : vector<8x32xf32>
    %268 = arith.mulf %263, %265 : vector<8x32xf32>
    %269 = arith.addf %267, %268 : vector<8x32xf32>
    %270 = math.tanh %269 : vector<8x32xf32>
    %271 = arith.mulf %266, %270 : vector<8x32xf32>
    %272 = tpu.concatenate %271, %248 in 1 : vector<8x32xf32>, vector<8x32xf32> -> vector<8x64xf32>
    %273 = arith.truncf %272 : vector<8x64xf32> to vector<8x64xbf16>
    %cst_54 = arith.constant dense<0.000000e+00> : vector<8x128xf32>
    %274 = tpu.matmul %273, %2, %cst_54 {dimension_numbers = #tpu.dot_dimension_numbers<[1], [0], [0], [1], [0, 0, 1, 1], [], []>} : vector<8x64xbf16>, vector<64x128xbf16>, vector<8x128xf32> -> vector<8x128xf32>
    %275 = arith.addf %274, %6 : vector<8x128xf32>
    %276 = arith.negf %275 : vector<8x128xf32>
    %277 = math.exp %276 : vector<8x128xf32>
    %cst_55 = arith.constant 1.000000e+00 : f32
    %278 = vector.broadcast %cst_55 : f32 to vector<8x128xf32>
    %279 = arith.addf %278, %277 : vector<8x128xf32>
    %280 = arith.divf %278, %279 : vector<8x128xf32>
    %cst_56 = arith.constant 2.000000e+00 : f32
    %281 = vector.broadcast %cst_56 : f32 to vector<8x128xf32>
    %282 = arith.mulf %281, %280 : vector<8x128xf32>
    %cst_57 = arith.constant 1.000000e+00 : f32
    %283 = vector.broadcast %cst_57 : f32 to vector<8x128xf32>
    %284 = arith.subf %282, %283 : vector<8x128xf32>
    %285 = arith.select %17, %284, %280 : vector<8x128xi1>, vector<8x128xf32>
    %286 = vector.extract_strided_slice %285 {offsets = [0, 0], sizes = [8, 32], strides = [1, 1]} : vector<8x128xf32> to vector<8x32xf32>
    %287 = vector.extract_strided_slice %285 {offsets = [0, 32], sizes = [8, 32], strides = [1, 1]} : vector<8x128xf32> to vector<8x32xf32>
    %288 = vector.extract_strided_slice %285 {offsets = [0, 64], sizes = [8, 32], strides = [1, 1]} : vector<8x128xf32> to vector<8x32xf32>
    %289 = vector.extract_strided_slice %285 {offsets = [0, 96], sizes = [8, 32], strides = [1, 1]} : vector<8x128xf32> to vector<8x32xf32>
    %290 = arith.mulf %287, %246 : vector<8x32xf32>
    %291 = arith.mulf %286, %288 : vector<8x32xf32>
    %292 = arith.addf %290, %291 : vector<8x32xf32>
    %293 = math.tanh %292 : vector<8x32xf32>
    %294 = arith.mulf %289, %293 : vector<8x32xf32>
    %295 = vector.extract_strided_slice %11 {offsets = [48, 0], sizes = [8, 128], strides = [1, 1]} : vector<64x128xf32> to vector<8x128xf32>
    %296 = arith.truncf %271 : vector<8x32xf32> to vector<8x32xbf16>
    %cst_58 = arith.constant dense<0.000000e+00> : vector<8x128xf32>
    %297 = tpu.matmul %296, %1, %cst_58 {dimension_numbers = #tpu.dot_dimension_numbers<[1], [0], [0], [1], [0, 0, 1, 1], [], []>} : vector<8x32xbf16>, vector<32x128xbf16>, vector<8x128xf32> -> vector<8x128xf32>
    %298 = arith.addf %295, %297 : vector<8x128xf32>
    %299 = arith.negf %298 : vector<8x128xf32>
    %300 = math.exp %299 : vector<8x128xf32>
    %cst_59 = arith.constant 1.000000e+00 : f32
    %301 = vector.broadcast %cst_59 : f32 to vector<8x128xf32>
    %302 = arith.addf %301, %300 : vector<8x128xf32>
    %303 = arith.divf %301, %302 : vector<8x128xf32>
    %cst_60 = arith.constant 2.000000e+00 : f32
    %304 = vector.broadcast %cst_60 : f32 to vector<8x128xf32>
    %305 = arith.mulf %304, %303 : vector<8x128xf32>
    %cst_61 = arith.constant 1.000000e+00 : f32
    %306 = vector.broadcast %cst_61 : f32 to vector<8x128xf32>
    %307 = arith.subf %305, %306 : vector<8x128xf32>
    %308 = arith.select %17, %307, %303 : vector<8x128xi1>, vector<8x128xf32>
    %309 = vector.extract_strided_slice %308 {offsets = [0, 0], sizes = [8, 32], strides = [1, 1]} : vector<8x128xf32> to vector<8x32xf32>
    %310 = vector.extract_strided_slice %308 {offsets = [0, 32], sizes = [8, 32], strides = [1, 1]} : vector<8x128xf32> to vector<8x32xf32>
    %311 = vector.extract_strided_slice %308 {offsets = [0, 64], sizes = [8, 32], strides = [1, 1]} : vector<8x128xf32> to vector<8x32xf32>
    %312 = vector.extract_strided_slice %308 {offsets = [0, 96], sizes = [8, 32], strides = [1, 1]} : vector<8x128xf32> to vector<8x32xf32>
    %313 = arith.mulf %310, %269 : vector<8x32xf32>
    %314 = arith.mulf %309, %311 : vector<8x32xf32>
    %315 = arith.addf %313, %314 : vector<8x32xf32>
    %316 = math.tanh %315 : vector<8x32xf32>
    %317 = arith.mulf %312, %316 : vector<8x32xf32>
    %318 = tpu.concatenate %317, %294 in 1 : vector<8x32xf32>, vector<8x32xf32> -> vector<8x64xf32>
    %319 = arith.truncf %318 : vector<8x64xf32> to vector<8x64xbf16>
    %cst_62 = arith.constant dense<0.000000e+00> : vector<8x128xf32>
    %320 = tpu.matmul %319, %2, %cst_62 {dimension_numbers = #tpu.dot_dimension_numbers<[1], [0], [0], [1], [0, 0, 1, 1], [], []>} : vector<8x64xbf16>, vector<64x128xbf16>, vector<8x128xf32> -> vector<8x128xf32>
    %321 = arith.addf %320, %6 : vector<8x128xf32>
    %322 = arith.negf %321 : vector<8x128xf32>
    %323 = math.exp %322 : vector<8x128xf32>
    %cst_63 = arith.constant 1.000000e+00 : f32
    %324 = vector.broadcast %cst_63 : f32 to vector<8x128xf32>
    %325 = arith.addf %324, %323 : vector<8x128xf32>
    %326 = arith.divf %324, %325 : vector<8x128xf32>
    %cst_64 = arith.constant 2.000000e+00 : f32
    %327 = vector.broadcast %cst_64 : f32 to vector<8x128xf32>
    %328 = arith.mulf %327, %326 : vector<8x128xf32>
    %cst_65 = arith.constant 1.000000e+00 : f32
    %329 = vector.broadcast %cst_65 : f32 to vector<8x128xf32>
    %330 = arith.subf %328, %329 : vector<8x128xf32>
    %331 = arith.select %17, %330, %326 : vector<8x128xi1>, vector<8x128xf32>
    %332 = vector.extract_strided_slice %331 {offsets = [0, 0], sizes = [8, 32], strides = [1, 1]} : vector<8x128xf32> to vector<8x32xf32>
    %333 = vector.extract_strided_slice %331 {offsets = [0, 32], sizes = [8, 32], strides = [1, 1]} : vector<8x128xf32> to vector<8x32xf32>
    %334 = vector.extract_strided_slice %331 {offsets = [0, 64], sizes = [8, 32], strides = [1, 1]} : vector<8x128xf32> to vector<8x32xf32>
    %335 = vector.extract_strided_slice %331 {offsets = [0, 96], sizes = [8, 32], strides = [1, 1]} : vector<8x128xf32> to vector<8x32xf32>
    %336 = arith.mulf %333, %292 : vector<8x32xf32>
    %337 = arith.mulf %332, %334 : vector<8x32xf32>
    %338 = arith.addf %336, %337 : vector<8x32xf32>
    %339 = math.tanh %338 : vector<8x32xf32>
    %340 = arith.mulf %335, %339 : vector<8x32xf32>
    %341 = vector.extract_strided_slice %11 {offsets = [56, 0], sizes = [8, 128], strides = [1, 1]} : vector<64x128xf32> to vector<8x128xf32>
    %342 = arith.truncf %317 : vector<8x32xf32> to vector<8x32xbf16>
    %cst_66 = arith.constant dense<0.000000e+00> : vector<8x128xf32>
    %343 = tpu.matmul %342, %1, %cst_66 {dimension_numbers = #tpu.dot_dimension_numbers<[1], [0], [0], [1], [0, 0, 1, 1], [], []>} : vector<8x32xbf16>, vector<32x128xbf16>, vector<8x128xf32> -> vector<8x128xf32>
    %344 = arith.addf %341, %343 : vector<8x128xf32>
    %345 = arith.negf %344 : vector<8x128xf32>
    %346 = math.exp %345 : vector<8x128xf32>
    %cst_67 = arith.constant 1.000000e+00 : f32
    %347 = vector.broadcast %cst_67 : f32 to vector<8x128xf32>
    %348 = arith.addf %347, %346 : vector<8x128xf32>
    %349 = arith.divf %347, %348 : vector<8x128xf32>
    %cst_68 = arith.constant 2.000000e+00 : f32
    %350 = vector.broadcast %cst_68 : f32 to vector<8x128xf32>
    %351 = arith.mulf %350, %349 : vector<8x128xf32>
    %cst_69 = arith.constant 1.000000e+00 : f32
    %352 = vector.broadcast %cst_69 : f32 to vector<8x128xf32>
    %353 = arith.subf %351, %352 : vector<8x128xf32>
    %354 = arith.select %17, %353, %349 : vector<8x128xi1>, vector<8x128xf32>
    %355 = vector.extract_strided_slice %354 {offsets = [0, 0], sizes = [8, 32], strides = [1, 1]} : vector<8x128xf32> to vector<8x32xf32>
    %356 = vector.extract_strided_slice %354 {offsets = [0, 32], sizes = [8, 32], strides = [1, 1]} : vector<8x128xf32> to vector<8x32xf32>
    %357 = vector.extract_strided_slice %354 {offsets = [0, 64], sizes = [8, 32], strides = [1, 1]} : vector<8x128xf32> to vector<8x32xf32>
    %358 = vector.extract_strided_slice %354 {offsets = [0, 96], sizes = [8, 32], strides = [1, 1]} : vector<8x128xf32> to vector<8x32xf32>
    %359 = arith.mulf %356, %315 : vector<8x32xf32>
    %360 = arith.mulf %355, %357 : vector<8x32xf32>
    %361 = arith.addf %359, %360 : vector<8x32xf32>
    %362 = math.tanh %361 : vector<8x32xf32>
    %363 = arith.mulf %358, %362 : vector<8x32xf32>
    %364 = tpu.concatenate %363, %340 in 1 : vector<8x32xf32>, vector<8x32xf32> -> vector<8x64xf32>
    %365 = arith.truncf %364 : vector<8x64xf32> to vector<8x64xbf16>
    %cst_70 = arith.constant dense<0.000000e+00> : vector<8x128xf32>
    %366 = tpu.matmul %365, %2, %cst_70 {dimension_numbers = #tpu.dot_dimension_numbers<[1], [0], [0], [1], [0, 0, 1, 1], [], []>} : vector<8x64xbf16>, vector<64x128xbf16>, vector<8x128xf32> -> vector<8x128xf32>
    %367 = arith.addf %366, %6 : vector<8x128xf32>
    %368 = arith.negf %367 : vector<8x128xf32>
    %369 = math.exp %368 : vector<8x128xf32>
    %cst_71 = arith.constant 1.000000e+00 : f32
    %370 = vector.broadcast %cst_71 : f32 to vector<8x128xf32>
    %371 = arith.addf %370, %369 : vector<8x128xf32>
    %372 = arith.divf %370, %371 : vector<8x128xf32>
    %cst_72 = arith.constant 2.000000e+00 : f32
    %373 = vector.broadcast %cst_72 : f32 to vector<8x128xf32>
    %374 = arith.mulf %373, %372 : vector<8x128xf32>
    %cst_73 = arith.constant 1.000000e+00 : f32
    %375 = vector.broadcast %cst_73 : f32 to vector<8x128xf32>
    %376 = arith.subf %374, %375 : vector<8x128xf32>
    %377 = arith.select %17, %376, %372 : vector<8x128xi1>, vector<8x128xf32>
    %378 = vector.extract_strided_slice %377 {offsets = [0, 0], sizes = [8, 32], strides = [1, 1]} : vector<8x128xf32> to vector<8x32xf32>
    %379 = vector.extract_strided_slice %377 {offsets = [0, 32], sizes = [8, 32], strides = [1, 1]} : vector<8x128xf32> to vector<8x32xf32>
    %380 = vector.extract_strided_slice %377 {offsets = [0, 64], sizes = [8, 32], strides = [1, 1]} : vector<8x128xf32> to vector<8x32xf32>
    %381 = vector.extract_strided_slice %377 {offsets = [0, 96], sizes = [8, 32], strides = [1, 1]} : vector<8x128xf32> to vector<8x32xf32>
    %382 = arith.mulf %379, %338 : vector<8x32xf32>
    %383 = arith.mulf %378, %380 : vector<8x32xf32>
    %384 = arith.addf %382, %383 : vector<8x32xf32>
    %385 = math.tanh %384 : vector<8x32xf32>
    %386 = arith.mulf %381, %385 : vector<8x32xf32>
    %c0_74 = arith.constant 0 : index
    %c0_75 = arith.constant 0 : index
    %387 = vector.load %arg3[%c0_74, %c0_75] : memref<32x9xf32, #tpu.memory_space<vmem>>, vector<32x9xf32>
    %cst_76 = arith.constant dense<0.000000e+00> : vector<8x9xf32>
    %388 = tpu.matmul %386, %387, %cst_76 {dimension_numbers = #tpu.dot_dimension_numbers<[1], [0], [0], [1], [0, 0, 1, 1], [], []>} : vector<8x32xf32>, vector<32x9xf32>, vector<8x9xf32> -> vector<8x9xf32>
    %389 = vector.extract_strided_slice %7 {offsets = [0, 0], sizes = [1, 9], strides = [1, 1]} : vector<1x128xf32> to vector<1x9xf32>
    %390 = vector.broadcast %389 : vector<1x9xf32> to vector<8x9xf32>
    %391 = arith.addf %388, %390 : vector<8x9xf32>
    %c0_77 = arith.constant 0 : index
    %c0_78 = arith.constant 0 : index
    %392 = vector.load %arg4[%c0_77, %c0_78] : memref<8x9xf32, #tpu.memory_space<vmem>>, vector<8x9xf32>
    tpu.vector_store %arg4[%c0_77, %c0_78], %391 {strides = array<i32>} : memref<8x9xf32, #tpu.memory_space<vmem>>, vector<8x9xf32>,
    return
  }
}

</mosaic_0001>

<llo_original>
// kernel: tpu_custom_call.1
$region0: #{tpu_custom_call.1}
  #allocation0 [shape = 'u32[]', space=smem, size = 0x4, offset = 0x4, fixed_abs, tag = 'smem constant byte address 0x4 - core index']
  #allocation1 [shape = 'u32[144,128]{1,0:T(1,128)}', space=vmem, size = 0x12000, scoped, tag = 'internal scratch']
  %s0 = inlined_call_operand.vmem [shape: bf16[64,32], index: 0, kind: input, shape index: {}]
  %s1 = inlined_call_operand.vmem [shape: bf16[128,128], index: 1, kind: input, shape index: {}]
  %s2 = inlined_call_operand.vmem [shape: f32[3,128], index: 2, kind: input, shape index: {}]
  %s3 = inlined_call_operand.vmem [shape: f32[32,9], index: 3, kind: input, shape index: {}]
  %s4 = inlined_call_operand.hbm [shape: f32[8,9], index: 4, kind: output, shape index: {}]
  %s5 = sld [smem:[#allocation0]]
  $region26: #{tpu_custom_call.1} parent=0
    _
  %s7 = ssub.s32 1, %s5
  %s8 = scalar_select 0, %s7, %s5
  $region1: #{tpu_custom_call.1} parent=0
    #allocation2 [shape = 'u8[4096]{0}', space=vmem, size = 0x1000, scoped, tag = 'output window, operand 0, single buffered']
    #allocation3 [shape = 's32[1]{0}', space=sflag, size = 0x4, scoped, tag = 'scoped memory for tpu_custom_call.1']
    %9 = vsyncpa [#allocation3], 0
    // Predicated region
    $region2: #{tpu_custom_call.1} parent=1 // pred_check
      _
    $region3: #{tpu_custom_call.1} parent=1 // pred_check_branch
      %11 = sbr.rel (0) target = $region5
    $region4: #{tpu_custom_call.1} parent=1 // pred_region
      _
    $region5: #{tpu_custom_call.1} parent=1 // pred_fallthru
      _
    // Predicated region
    $region6: #{tpu_custom_call.1} parent=1 // pred_check
      _
    $region7: #{tpu_custom_call.1} parent=1 // pred_check_branch
      %13 = sbr.rel (0) target = $region9
    $region8: #{tpu_custom_call.1} parent=1 // pred_region
      _
    $region9: #{tpu_custom_call.1} parent=1 // pred_fallthru
      _
    // Predicated region
    $region10: #{tpu_custom_call.1} parent=1 // pred_check
      _
    $region11: #{tpu_custom_call.1} parent=1 // pred_check_branch
      %15 = sbr.rel (0) target = $region13
    $region12: #{tpu_custom_call.1} parent=1 // pred_region
      _
    $region13: #{tpu_custom_call.1} parent=1 // pred_fallthru
      _
    // Predicated region
    $region14: #{tpu_custom_call.1} parent=1 // pred_check
      _
    $region15: #{tpu_custom_call.1} parent=1 // pred_check_branch
      %17 = sbr.rel (0) target = $region17
    $region16: #{tpu_custom_call.1} parent=1 // pred_region
      _
    $region17: #{tpu_custom_call.1} parent=1 // pred_fallthru
      _
    %v19 = vld [vmem:[%s1] sm:$0xf]
    %v20 = vld [vmem:[%s1 + $0x4] sm:$0xf]
    %v21 = vld [vmem:[%s1 + $0x8] sm:$0xf]
    %v22 = vld [vmem:[%s1 + $0xc] sm:$0xf]
    %v23 = vld [vmem:[%s1 + $0x10] sm:$0xf]
    %v24 = vld [vmem:[%s1 + $0x14] sm:$0xf]
    %v25 = vld [vmem:[%s1 + $0x18] sm:$0xf]
    %v26 = vld [vmem:[%s1 + $0x1c] sm:$0xf]
    %v27 = vld [vmem:[%s1 + $0x20] sm:$0xf]
    %v28 = vld [vmem:[%s1 + $0x24] sm:$0xf]
    %v29 = vld [vmem:[%s1 + $0x28] sm:$0xf]
    %v30 = vld [vmem:[%s1 + $0x2c] sm:$0xf]
    %v31 = vld [vmem:[%s1 + $0x30] sm:$0xf]
    %v32 = vld [vmem:[%s1 + $0x34] sm:$0xf]
    %v33 = vld [vmem:[%s1 + $0x38] sm:$0xf]
    %v34 = vld [vmem:[%s1 + $0x3c] sm:$0xf]
    %v35 = vld [vmem:[%s2] sm:$0x1]
    %v36 = vld [vmem:[%s2 + $0x1] sm:$0x1]
    %v37 = vlaneseq
    %v38 = vshrl.u32 %v37, 7
    %v39 = vsub.s32 0, %v38
    %v40 = vrot.slane %v36, %v39
    %v41 = vld [vmem:[%s2 + $0x2] sm:$0x1]
    %v42 = vld [vmem:[%s0] sm:$0xf]
    %v43 = vld [vmem:[%s0 + $0x4] sm:$0xf]
    %v44 = vld [vmem:[%s0 + $0x8] sm:$0xf]
    %v45 = vld [vmem:[%s0 + $0xc] sm:$0xf]
    %v46 = vld [vmem:[%s0 + $0x10] sm:$0xf]
    %v47 = vld [vmem:[%s0 + $0x14] sm:$0xf]
    %v48 = vld [vmem:[%s0 + $0x18] sm:$0xf]
    %v49 = vld [vmem:[%s0 + $0x1c] sm:$0xf]
    %v50 = vlaneseq
    %v51 = vshrl.u32 %v50, 7
    %v52 = vsub.s32 0, %v51
    %v53 = vrot.slane %v35, %v52
    %v62 = vunpack.c.l.b16 %v42
    %v63 = vunpack.c.l.b16 %v43
    %v64 = vunpack.c.l.b16 %v44
    %v65 = vunpack.c.l.b16 %v45
    %v66 = vunpack.c.l.b16 %v46
    %v67 = vunpack.c.l.b16 %v47
    %v68 = vunpack.c.l.b16 %v48
    %v69 = vunpack.c.l.b16 %v49
    %v70 = vpack.c.b16 %v63, %v62
    %v71 = vpack.c.b16 %v65, %v64
    %v72 = vpack.c.b16 %v67, %v66
    %v73 = vpack.c.b16 %v69, %v68
    %v78 = vunpack.c.l.b16 %v19
    %v79 = vunpack.c.l.b16 %v20
    %v80 = vunpack.c.l.b16 %v21
    %v81 = vunpack.c.l.b16 %v22
    %v82 = vpack.c.b16 %v79, %v78
    %v83 = vpack.c.b16 %v81, %v80
    %vm86 = vcmask 261120
    %v88 = vsel %vm86, %v70, 0
    %v91 = vsel %vm86, %v71, 0
    %v94 = vsel %vm86, %v72, 0
    %v97 = vsel %vm86, %v73, 0
    %99 = vmatprep.subr.bf16.mxu0 0
    %100 = vmatpush1.bf16.msra.mxu0 %v82
    %101 = vmatprep.subr.bf16.mxu0 0
    %102 = vmatpush1.bf16.msra.mxu0 %v83
    %103 = vmatprep.subr.bf16.mxu0 0
    %104 = vmatpush1.bf16.msra.mxu0 0
    %105 = vmatprep.subr.bf16.mxu0 0
    %106 = vmatpush1.bf16.msra.mxu0 0
    %107 = vmatprep.subr.bf16.mxu0 0
    %108 = vmatpush1.bf16.msra.mxu0 0
    %109 = vmatprep.subr.bf16.mxu0 0
    %110 = vmatpush1.bf16.msra.mxu0 0
    %111 = vmatprep.subr.bf16.mxu0 0
    %112 = vmatpush1.bf16.msra.mxu0 0
    %113 = vmatprep.subr.bf16.mxu0 0
    %114 = vmatpush1.bf16.msra.mxu0 0
    %115 = vmatprep.subr.bf16.mxu0 0
    %116 = vmatpush1.bf16.msra.mxu0 0
    %117 = vmatprep.subr.bf16.mxu0 0
    %118 = vmatpush1.bf16.msra.mxu0 0
    %119 = vmatprep.subr.bf16.mxu0 0
    %120 = vmatpush1.bf16.msra.mxu0 0
    %121 = vmatprep.subr.bf16.mxu0 0
    %122 = vmatpush1.bf16.msra.mxu0 0
    %123 = vmatprep.subr.bf16.mxu0 0
    %124 = vmatpush1.bf16.msra.mxu0 0
    %125 = vmatprep.subr.bf16.mxu0 0
    %126 = vmatpush1.bf16.msra.mxu0 0
    %127 = vmatprep.subr.bf16.mxu0 0
    %128 = vmatpush1.bf16.msra.mxu0 0
    %129 = vmatprep.subr.bf16.mxu0 0
    %130 = vmatpush1.bf16.msra.mxu0 0
    %131 = vmatprep.mubr.bf16.mxu0 0
    %132 = vmatmul.mubr.bf16.gmra.mrb[0].mxu0 %v88
    %v133 = vpop.f32.mrb[0].mxu0
    %v134 = vadd.f32 %v53, %v133
    %v135 = vpop.f32.mrb[0].mxu0
    %v136 = vpop.f32.mrb[0].mxu0
    %v137 = vadd.f32 %v53, %v136
    %v138 = vpop.f32.mrb[0].mxu0
    %139 = vmatprep.mubr.bf16.mxu0 0
    %140 = vmatmul.mubr.bf16.gmra.mrb[0].mxu0 %v91
    %v141 = vpop.f32.mrb[0].mxu0
    %v142 = vadd.f32 %v53, %v141
    %v143 = vpop.f32.mrb[0].mxu0
    %v144 = vpop.f32.mrb[0].mxu0
    %v145 = vadd.f32 %v53, %v144
    %v146 = vpop.f32.mrb[0].mxu0
    %147 = vmatprep.mubr.bf16.mxu0 0
    %148 = vmatmul.mubr.bf16.gmra.mrb[0].mxu0 %v94
    %v149 = vpop.f32.mrb[0].mxu0
    %v150 = vadd.f32 %v53, %v149
    %v151 = vpop.f32.mrb[0].mxu0
    %v152 = vpop.f32.mrb[0].mxu0
    %v153 = vadd.f32 %v53, %v152
    %v154 = vpop.f32.mrb[0].mxu0
    %155 = vmatprep.mubr.bf16.mxu0 0
    %156 = vmatmul.mubr.bf16.gmra.mrb[0].mxu0 %v97
    %v157 = vpop.f32.mrb[0].mxu0
    %v158 = vadd.f32 %v53, %v157
    %v159 = vpop.f32.mrb[0].mxu0
    %v160 = vpop.f32.mrb[0].mxu0
    %v161 = vadd.f32 %v53, %v160
    %v162 = vpop.f32.mrb[0].mxu0
    %163 = vdwg.mxu0
    %v164 = vlaneseq
    %v165 = vand.u32 %v164, 127
    %vm166 = vcmp.ge.s32.totalorder %v165, 64
    %vm167 = vcmp.lt.s32.totalorder %v165, 96
    %vm168 = vmand %vm166, %vm167
    %v173 = vunpack.c.l.b16 %v23
    %v174 = vunpack.c.l.b16 %v24
    %v175 = vunpack.c.l.b16 %v25
    %v176 = vunpack.c.l.b16 %v26
    %v177 = vpack.c.b16 %v174, %v173
    %v178 = vpack.c.b16 %v176, %v175
    %v182 = vsel %vm86, 0, 0
    %184 = vmatprep.subr.bf16.mxu0 0
    %185 = vmatpush1.bf16.msra.mxu0 %v177
    %186 = vmatprep.subr.bf16.mxu0 0
    %187 = vmatpush1.bf16.msra.mxu0 %v178
    %188 = vmatprep.subr.bf16.mxu0 0
    %189 = vmatpush1.bf16.msra.mxu0 0
    %190 = vmatprep.subr.bf16.mxu0 0
    %191 = vmatpush1.bf16.msra.mxu0 0
    %192 = vmatprep.subr.bf16.mxu0 0
    %193 = vmatpush1.bf16.msra.mxu0 0
    %194 = vmatprep.subr.bf16.mxu0 0
    %195 = vmatpush1.bf16.msra.mxu0 0
    %196 = vmatprep.subr.bf16.mxu0 0
    %197 = vmatpush1.bf16.msra.mxu0 0
    %198 = vmatprep.subr.bf16.mxu0 0
    %199 = vmatpush1.bf16.msra.mxu0 0
    %200 = vmatprep.subr.bf16.mxu0 0
    %201 = vmatpush1.bf16.msra.mxu0 0
    %202 = vmatprep.subr.bf16.mxu0 0
    %203 = vmatpush1.bf16.msra.mxu0 0
    %204 = vmatprep.subr.bf16.mxu0 0
    %205 = vmatpush1.bf16.msra.mxu0 0
    %206 = vmatprep.subr.bf16.mxu0 0
    %207 = vmatpush1.bf16.msra.mxu0 0
    %208 = vmatprep.subr.bf16.mxu0 0
    %209 = vmatpush1.bf16.msra.mxu0 0
    %210 = vmatprep.subr.bf16.mxu0 0
    %211 = vmatpush1.bf16.msra.mxu0 0
    %212 = vmatprep.subr.bf16.mxu0 0
    %213 = vmatpush1.bf16.msra.mxu0 0
    %214 = vmatprep.subr.bf16.mxu0 0
    %215 = vmatpush1.bf16.msra.mxu0 0
    %216 = vmatprep.mubr.bf16.mxu0 0
    %217 = vmatmul.mubr.bf16.gmra.mrb[0].mxu0 %v182
    %v218 = vpop.f32.mrb[0].mxu0
    %v219 = vadd.f32 0.0, %v218
    %v220 = vpop.f32.mrb[0].mxu0
    %v221 = vpop.f32.mrb[0].mxu0
    %v222 = vpop.f32.mrb[0].mxu0
    %223 = vdwg.mxu0
    %v224 = vadd.f32 %v134, %v219
    %v225 = vxor.u32 %v224, 2147483648
    %v226 = vmul.f32 %v225, 1.442695
    %v227 = vpow.pop %v226
    %v228 = vadd.f32 %v227, 1.0
    %v229 = vrcp.pop %v228
    %v230 = vmul.f32 1.0, %v229
    %v231 = vmul.f32 %v230, 2.0
    %v232 = vsub.f32 %v231, 1.0
    %v233 = vsel %vm168, %v232, %v230
    %v234 = vmul.f32 %v233, 0.0
    %236 = vrot.lane.b32.xlu0 %v233, 64
    %v237 = vpop.permute.xlu0 %236
    %v239 = vmul.f32 %v233, %v237
    %241 = vrot.lane.b32.xlu0 %v239, 32
    %v242 = vpop.permute.xlu0 %241
    %v244 = vadd.f32 %v234, %v242
    %v245 = vtanh.pop %v244
    %247 = vrot.lane.b32.xlu0 %v245, 64
    %v248 = vpop.permute.xlu0 %247
    %v250 = vmul.f32 %v233, %v248
    %252 = vrot.lane.b32.xlu0 %v250, 32
    %v253 = vpop.permute.xlu0 %252
    %v255 = vsel %vm86, %v253, 0.0
    %v256 = vpack.c.bf16 %v255, %v255
    %v265 = vunpack.c.l.b16 %v27
    %v266 = vunpack.c.l.b16 %v28
    %v267 = vunpack.c.l.b16 %v29
    %v268 = vunpack.c.l.b16 %v30
    %v269 = vunpack.c.l.b16 %v31
    %v270 = vunpack.c.l.b16 %v32
    %v271 = vunpack.c.l.b16 %v33
    %v272 = vunpack.c.l.b16 %v34
    %v273 = vpack.c.b16 %v266, %v265
    %v274 = vpack.c.b16 %v268, %v267
    %v275 = vpack.c.b16 %v270, %v269
    %v276 = vpack.c.b16 %v272, %v271
    %vm281 = vcmask 523264
    %v283 = vsel %vm281, %v256, 0
    %285 = vmatprep.subr.bf16.mxu0 0
    %286 = vmatpush1.bf16.msra.mxu0 %v273
    %287 = vmatprep.subr.bf16.mxu0 0
    %288 = vmatpush1.bf16.msra.mxu0 %v274
    %289 = vmatprep.subr.bf16.mxu0 0
    %290 = vmatpush1.bf16.msra.mxu0 %v275
    %291 = vmatprep.subr.bf16.mxu0 0
    %292 = vmatpush1.bf16.msra.mxu0 %v276
    %293 = vmatprep.subr.bf16.mxu0 0
    %294 = vmatpush1.bf16.msra.mxu0 0
    %295 = vmatprep.subr.bf16.mxu0 0
    %296 = vmatpush1.bf16.msra.mxu0 0
    %297 = vmatprep.subr.bf16.mxu0 0
    %298 = vmatpush1.bf16.msra.mxu0 0
    %299 = vmatprep.subr.bf16.mxu0 0
    %300 = vmatpush1.bf16.msra.mxu0 0
    %301 = vmatprep.subr.bf16.mxu0 0
    %302 = vmatpush1.bf16.msra.mxu0 0
    %303 = vmatprep.subr.bf16.mxu0 0
    %304 = vmatpush1.bf16.msra.mxu0 0
    %305 = vmatprep.subr.bf16.mxu0 0
    %306 = vmatpush1.bf16.msra.mxu0 0
    %307 = vmatprep.subr.bf16.mxu0 0
    %308 = vmatpush1.bf16.msra.mxu0 0
    %309 = vmatprep.subr.bf16.mxu0 0
    %310 = vmatpush1.bf16.msra.mxu0 0
    %311 = vmatprep.subr.bf16.mxu0 0
    %312 = vmatpush1.bf16.msra.mxu0 0
    %313 = vmatprep.subr.bf16.mxu0 0
    %314 = vmatpush1.bf16.msra.mxu0 0
    %315 = vmatprep.subr.bf16.mxu0 0
    %316 = vmatpush1.bf16.msra.mxu0 0
    %317 = vmatprep.mubr.bf16.mxu0 0
    %318 = vmatmul.mubr.bf16.gmra.mrb[0].mxu0 %v283
    %v319 = vpop.f32.mrb[0].mxu0
    %v320 = vadd.f32 %v40, %v319
    %v321 = vpop.f32.mrb[0].mxu0
    %v322 = vpop.f32.mrb[0].mxu0
    %v323 = vpop.f32.mrb[0].mxu0
    %324 = vdwg.mxu0
    %v325 = vxor.u32 %v320, 2147483648
    %v326 = vmul.f32 %v325, 1.442695
    %v327 = vpow.pop %v326
    %v328 = vadd.f32 %v327, 1.0
    %v329 = vrcp.pop %v328
    %v330 = vmul.f32 1.0, %v329
    %v331 = vmul.f32 %v330, 2.0
    %v332 = vsub.f32 %v331, 1.0
    %v333 = vsel %vm168, %v332, %v330
    %v334 = vmul.f32 %v333, 0.0
    %336 = vrot.lane.b32.xlu0 %v333, 64
    %v337 = vpop.permute.xlu0 %336
    %v339 = vmul.f32 %v333, %v337
    %341 = vrot.lane.b32.xlu0 %v339, 32
    %v342 = vpop.permute.xlu0 %341
    %v344 = vadd.f32 %v334, %v342
    %v345 = vtanh.pop %v344
    %347 = vrot.lane.b32.xlu0 %v345, 64
    %v348 = vpop.permute.xlu0 %347
    %v350 = vmul.f32 %v333, %v348
    %v351 = vpack.c.bf16 %v250, %v250
    %353 = vrot.lane.b32.xlu0 %v351, 32
    %v354 = vpop.permute.xlu0 %353
    %v356 = vsel %vm86, %v354, 0
    %358 = vmatprep.subr.bf16.mxu0 0
    %359 = vmatpush1.bf16.msra.mxu0 %v177
    %360 = vmatprep.subr.bf16.mxu0 0
    %361 = vmatpush1.bf16.msra.mxu0 %v178
    %362 = vmatprep.subr.bf16.mxu0 0
    %363 = vmatpush1.bf16.msra.mxu0 0
    %364 = vmatprep.subr.bf16.mxu0 0
    %365 = vmatpush1.bf16.msra.mxu0 0
    %366 = vmatprep.subr.bf16.mxu0 0
    %367 = vmatpush1.bf16.msra.mxu0 0
    %368 = vmatprep.subr.bf16.mxu0 0
    %369 = vmatpush1.bf16.msra.mxu0 0
    %370 = vmatprep.subr.bf16.mxu0 0
    %371 = vmatpush1.bf16.msra.mxu0 0
    %372 = vmatprep.subr.bf16.mxu0 0
    %373 = vmatpush1.bf16.msra.mxu0 0
    %374 = vmatprep.subr.bf16.mxu0 0
    %375 = vmatpush1.bf16.msra.mxu0 0
    %376 = vmatprep.subr.bf16.mxu0 0
    %377 = vmatpush1.bf16.msra.mxu0 0
    %378 = vmatprep.subr.bf16.mxu0 0
    %379 = vmatpush1.bf16.msra.mxu0 0
    %380 = vmatprep.subr.bf16.mxu0 0
    %381 = vmatpush1.bf16.msra.mxu0 0
    %382 = vmatprep.subr.bf16.mxu0 0
    %383 = vmatpush1.bf16.msra.mxu0 0
    %384 = vmatprep.subr.bf16.mxu0 0
    %385 = vmatpush1.bf16.msra.mxu0 0
    %386 = vmatprep.subr.bf16.mxu0 0
    %387 = vmatpush1.bf16.msra.mxu0 0
    %388 = vmatprep.subr.bf16.mxu0 0
    %389 = vmatpush1.bf16.msra.mxu0 0
    %390 = vmatprep.mubr.bf16.mxu0 0
    %391 = vmatmul.mubr.bf16.gmra.mrb[0].mxu0 %v356
    %v392 = vpop.f32.mrb[0].mxu0
    %v393 = vadd.f32 0.0, %v392
    %v394 = vpop.f32.mrb[0].mxu0
    %v395 = vpop.f32.mrb[0].mxu0
    %v396 = vpop.f32.mrb[0].mxu0
    %397 = vdwg.mxu0
    %v398 = vadd.f32 %v137, %v393
    %v399 = vxor.u32 %v398, 2147483648
    %v400 = vmul.f32 %v399, 1.442695
    %v401 = vpow.pop %v400
    %v402 = vadd.f32 %v401, 1.0
    %v403 = vrcp.pop %v402
    %v404 = vmul.f32 1.0, %v403
    %v405 = vmul.f32 %v404, 2.0
    %v406 = vsub.f32 %v405, 1.0
    %v407 = vsel %vm168, %v406, %v404
    %v408 = vmul.f32 %v407, %v244
    %410 = vrot.lane.b32.xlu0 %v407, 64
    %v411 = vpop.permute.xlu0 %410
    %v413 = vmul.f32 %v407, %v411
    %415 = vrot.lane.b32.xlu0 %v413, 32
    %v416 = vpop.permute.xlu0 %415
    %v418 = vadd.f32 %v408, %v416
    %v419 = vtanh.pop %v418
    %421 = vrot.lane.b32.xlu0 %v419, 64
    %v422 = vpop.permute.xlu0 %421
    %v424 = vmul.f32 %v407, %v422
    %426 = vrot.lane.b32.xlu0 %v424, 32
    %v427 = vpop.permute.xlu0 %426
    %430 = vrot.lane.b32.xlu0 %v350, 64
    %v431 = vpop.permute.xlu0 %430
    %v433 = vsel %vm86, %v427, %v431
    %v434 = vpack.c.bf16 %v433, %v433
    %v436 = vsel %vm281, %v434, 0
    %438 = vmatprep.subr.bf16.mxu0 0
    %439 = vmatpush1.bf16.msra.mxu0 %v273
    %440 = vmatprep.subr.bf16.mxu0 0
    %441 = vmatpush1.bf16.msra.mxu0 %v274
    %442 = vmatprep.subr.bf16.mxu0 0
    %443 = vmatpush1.bf16.msra.mxu0 %v275
    %444 = vmatprep.subr.bf16.mxu0 0
    %445 = vmatpush1.bf16.msra.mxu0 %v276
    %446 = vmatprep.subr.bf16.mxu0 0
    %447 = vmatpush1.bf16.msra.mxu0 0
    %448 = vmatprep.subr.bf16.mxu0 0
    %449 = vmatpush1.bf16.msra.mxu0 0
    %450 = vmatprep.subr.bf16.mxu0 0
    %451 = vmatpush1.bf16.msra.mxu0 0
    %452 = vmatprep.subr.bf16.mxu0 0
    %453 = vmatpush1.bf16.msra.mxu0 0
    %454 = vmatprep.subr.bf16.mxu0 0
    %455 = vmatpush1.bf16.msra.mxu0 0
    %456 = vmatprep.subr.bf16.mxu0 0
    %457 = vmatpush1.bf16.msra.mxu0 0
    %458 = vmatprep.subr.bf16.mxu0 0
    %459 = vmatpush1.bf16.msra.mxu0 0
    %460 = vmatprep.subr.bf16.mxu0 0
    %461 = vmatpush1.bf16.msra.mxu0 0
    %462 = vmatprep.subr.bf16.mxu0 0
    %463 = vmatpush1.bf16.msra.mxu0 0
    %464 = vmatprep.subr.bf16.mxu0 0
    %465 = vmatpush1.bf16.msra.mxu0 0
    %466 = vmatprep.subr.bf16.mxu0 0
    %467 = vmatpush1.bf16.msra.mxu0 0
    %468 = vmatprep.subr.bf16.mxu0 0
    %469 = vmatpush1.bf16.msra.mxu0 0
    %470 = vmatprep.mubr.bf16.mxu0 0
    %471 = vmatmul.mubr.bf16.gmra.mrb[0].mxu0 %v436
    %v472 = vpop.f32.mrb[0].mxu0
    %v473 = vadd.f32 %v40, %v472
    %v474 = vpop.f32.mrb[0].mxu0
    %v475 = vpop.f32.mrb[0].mxu0
    %v476 = vpop.f32.mrb[0].mxu0
    %477 = vdwg.mxu0
    %v478 = vxor.u32 %v473, 2147483648
    %v479 = vmul.f32 %v478, 1.442695
    %v480 = vpow.pop %v479
    %v481 = vadd.f32 %v480, 1.0
    %v482 = vrcp.pop %v481
    %v483 = vmul.f32 1.0, %v482
    %v484 = vmul.f32 %v483, 2.0
    %v485 = vsub.f32 %v484, 1.0
    %v486 = vsel %vm168, %v485, %v483
    %v487 = vmul.f32 %v486, %v344
    %489 = vrot.lane.b32.xlu0 %v486, 64
    %v490 = vpop.permute.xlu0 %489
    %v492 = vmul.f32 %v486, %v490
    %494 = vrot.lane.b32.xlu0 %v492, 32
    %v495 = vpop.permute.xlu0 %494
    %v497 = vadd.f32 %v487, %v495
    %v498 = vtanh.pop %v497
    %500 = vrot.lane.b32.xlu0 %v498, 64
    %v501 = vpop.permute.xlu0 %500
    %v503 = vmul.f32 %v486, %v501
    %v504 = vpack.c.bf16 %v424, %v424
    %506 = vrot.lane.b32.xlu0 %v504, 32
    %v507 = vpop.permute.xlu0 %506
    %v509 = vsel %vm86, %v507, 0
    %511 = vmatprep.subr.bf16.mxu0 0
    %512 = vmatpush1.bf16.msra.mxu0 %v177
    %513 = vmatprep.subr.bf16.mxu0 0
    %514 = vmatpush1.bf16.msra.mxu0 %v178
    %515 = vmatprep.subr.bf16.mxu0 0
    %516 = vmatpush1.bf16.msra.mxu0 0
    %517 = vmatprep.subr.bf16.mxu0 0
    %518 = vmatpush1.bf16.msra.mxu0 0
    %519 = vmatprep.subr.bf16.mxu0 0
    %520 = vmatpush1.bf16.msra.mxu0 0
    %521 = vmatprep.subr.bf16.mxu0 0
    %522 = vmatpush1.bf16.msra.mxu0 0
    %523 = vmatprep.subr.bf16.mxu0 0
    %524 = vmatpush1.bf16.msra.mxu0 0
    %525 = vmatprep.subr.bf16.mxu0 0
    %526 = vmatpush1.bf16.msra.mxu0 0
    %527 = vmatprep.subr.bf16.mxu0 0
    %528 = vmatpush1.bf16.msra.mxu0 0
    %529 = vmatprep.subr.bf16.mxu0 0
    %530 = vmatpush1.bf16.msra.mxu0 0
    %531 = vmatprep.subr.bf16.mxu0 0
    %532 = vmatpush1.bf16.msra.mxu0 0
    %533 = vmatprep.subr.bf16.mxu0 0
    %534 = vmatpush1.bf16.msra.mxu0 0
    %535 = vmatprep.subr.bf16.mxu0 0
    %536 = vmatpush1.bf16.msra.mxu0 0
    %537 = vmatprep.subr.bf16.mxu0 0
    %538 = vmatpush1.bf16.msra.mxu0 0
    %539 = vmatprep.subr.bf16.mxu0 0
    %540 = vmatpush1.bf16.msra.mxu0 0
    %541 = vmatprep.subr.bf16.mxu0 0
    %542 = vmatpush1.bf16.msra.mxu0 0
    %543 = vmatprep.mubr.bf16.mxu0 0
    %544 = vmatmul.mubr.bf16.gmra.mrb[0].mxu0 %v509
    %v545 = vpop.f32.mrb[0].mxu0
    %v546 = vadd.f32 0.0, %v545
    %v547 = vpop.f32.mrb[0].mxu0
    %v548 = vpop.f32.mrb[0].mxu0
    %v549 = vpop.f32.mrb[0].mxu0
    %550 = vdwg.mxu0
    %v551 = vadd.f32 %v142, %v546
    %v552 = vxor.u32 %v551, 2147483648
    %v553 = vmul.f32 %v552, 1.442695
    %v554 = vpow.pop %v553
    %v555 = vadd.f32 %v554, 1.0
    %v556 = vrcp.pop %v555
    %v557 = vmul.f32 1.0, %v556
    %v558 = vmul.f32 %v557, 2.0
    %v559 = vsub.f32 %v558, 1.0
    %v560 = vsel %vm168, %v559, %v557
    %v561 = vmul.f32 %v560, %v418
    %563 = vrot.lane.b32.xlu0 %v560, 64
    %v564 = vpop.permute.xlu0 %563
    %v566 = vmul.f32 %v560, %v564
    %568 = vrot.lane.b32.xlu0 %v566, 32
    %v569 = vpop.permute.xlu0 %568
    %v571 = vadd.f32 %v561, %v569
    %v572 = vtanh.pop %v571
    %574 = vrot.lane.b32.xlu0 %v572, 64
    %v575 = vpop.permute.xlu0 %574
    %v577 = vmul.f32 %v560, %v575
    %579 = vrot.lane.b32.xlu0 %v577, 32
    %v580 = vpop.permute.xlu0 %579
    %583 = vrot.lane.b32.xlu0 %v503, 64
    %v584 = vpop.permute.xlu0 %583
    %v586 = vsel %vm86, %v580, %v584
    %v587 = vpack.c.bf16 %v586, %v586
    %v589 = vsel %vm281, %v587, 0
    %591 = vmatprep.subr.bf16.mxu0 0
    %592 = vmatpush1.bf16.msra.mxu0 %v273
    %593 = vmatprep.subr.bf16.mxu0 0
    %594 = vmatpush1.bf16.msra.mxu0 %v274
    %595 = vmatprep.subr.bf16.mxu0 0
    %596 = vmatpush1.bf16.msra.mxu0 %v275
    %597 = vmatprep.subr.bf16.mxu0 0
    %598 = vmatpush1.bf16.msra.mxu0 %v276
    %599 = vmatprep.subr.bf16.mxu0 0
    %600 = vmatpush1.bf16.msra.mxu0 0
    %601 = vmatprep.subr.bf16.mxu0 0
    %602 = vmatpush1.bf16.msra.mxu0 0
    %603 = vmatprep.subr.bf16.mxu0 0
    %604 = vmatpush1.bf16.msra.mxu0 0
    %605 = vmatprep.subr.bf16.mxu0 0
    %606 = vmatpush1.bf16.msra.mxu0 0
    %607 = vmatprep.subr.bf16.mxu0 0
    %608 = vmatpush1.bf16.msra.mxu0 0
    %609 = vmatprep.subr.bf16.mxu0 0
    %610 = vmatpush1.bf16.msra.mxu0 0
    %611 = vmatprep.subr.bf16.mxu0 0
    %612 = vmatpush1.bf16.msra.mxu0 0
    %613 = vmatprep.subr.bf16.mxu0 0
    %614 = vmatpush1.bf16.msra.mxu0 0
    %615 = vmatprep.subr.bf16.mxu0 0
    %616 = vmatpush1.bf16.msra.mxu0 0
    %617 = vmatprep.subr.bf16.mxu0 0
    %618 = vmatpush1.bf16.msra.mxu0 0
    %619 = vmatprep.subr.bf16.mxu0 0
    %620 = vmatpush1.bf16.msra.mxu0 0
    %621 = vmatprep.subr.bf16.mxu0 0
    %622 = vmatpush1.bf16.msra.mxu0 0
    %623 = vmatprep.mubr.bf16.mxu0 0
    %624 = vmatmul.mubr.bf16.gmra.mrb[0].mxu0 %v589
    %v625 = vpop.f32.mrb[0].mxu0
    %v626 = vadd.f32 %v40, %v625
    %v627 = vpop.f32.mrb[0].mxu0
    %v628 = vpop.f32.mrb[0].mxu0
    %v629 = vpop.f32.mrb[0].mxu0
    %630 = vdwg.mxu0
    %v631 = vxor.u32 %v626, 2147483648
    %v632 = vmul.f32 %v631, 1.442695
    %v633 = vpow.pop %v632
    %v634 = vadd.f32 %v633, 1.0
    %v635 = vrcp.pop %v634
    %v636 = vmul.f32 1.0, %v635
    %v637 = vmul.f32 %v636, 2.0
    %v638 = vsub.f32 %v637, 1.0
    %v639 = vsel %vm168, %v638, %v636
    %v640 = vmul.f32 %v639, %v497
    %642 = vrot.lane.b32.xlu0 %v639, 64
    %v643 = vpop.permute.xlu0 %642
    %v645 = vmul.f32 %v639, %v643
    %647 = vrot.lane.b32.xlu0 %v645, 32
    %v648 = vpop.permute.xlu0 %647
    %v650 = vadd.f32 %v640, %v648
    %v651 = vtanh.pop %v650
    %653 = vrot.lane.b32.xlu0 %v651, 64
    %v654 = vpop.permute.xlu0 %653
    %v656 = vmul.f32 %v639, %v654
    %v657 = vpack.c.bf16 %v577, %v577
    %659 = vrot.lane.b32.xlu0 %v657, 32
    %v660 = vpop.permute.xlu0 %659
    %v662 = vsel %vm86, %v660, 0
    %664 = vmatprep.subr.bf16.mxu0 0
    %665 = vmatpush1.bf16.msra.mxu0 %v177
    %666 = vmatprep.subr.bf16.mxu0 0
    %667 = vmatpush1.bf16.msra.mxu0 %v178
    %668 = vmatprep.subr.bf16.mxu0 0
    %669 = vmatpush1.bf16.msra.mxu0 0
    %670 = vmatprep.subr.bf16.mxu0 0
    %671 = vmatpush1.bf16.msra.mxu0 0
    %672 = vmatprep.subr.bf16.mxu0 0
    %673 = vmatpush1.bf16.msra.mxu0 0
    %674 = vmatprep.subr.bf16.mxu0 0
    %675 = vmatpush1.bf16.msra.mxu0 0
    %676 = vmatprep.subr.bf16.mxu0 0
    %677 = vmatpush1.bf16.msra.mxu0 0
    %678 = vmatprep.subr.bf16.mxu0 0
    %679 = vmatpush1.bf16.msra.mxu0 0
    %680 = vmatprep.subr.bf16.mxu0 0
    %681 = vmatpush1.bf16.msra.mxu0 0
    %682 = vmatprep.subr.bf16.mxu0 0
    %683 = vmatpush1.bf16.msra.mxu0 0
    %684 = vmatprep.subr.bf16.mxu0 0
    %685 = vmatpush1.bf16.msra.mxu0 0
    %686 = vmatprep.subr.bf16.mxu0 0
    %687 = vmatpush1.bf16.msra.mxu0 0
    %688 = vmatprep.subr.bf16.mxu0 0
    %689 = vmatpush1.bf16.msra.mxu0 0
    %690 = vmatprep.subr.bf16.mxu0 0
    %691 = vmatpush1.bf16.msra.mxu0 0
    %692 = vmatprep.subr.bf16.mxu0 0
    %693 = vmatpush1.bf16.msra.mxu0 0
    %694 = vmatprep.subr.bf16.mxu0 0
    %695 = vmatpush1.bf16.msra.mxu0 0
    %696 = vmatprep.mubr.bf16.mxu0 0
    %697 = vmatmul.mubr.bf16.gmra.mrb[0].mxu0 %v662
    %v698 = vpop.f32.mrb[0].mxu0
    %v699 = vadd.f32 0.0, %v698
    %v700 = vpop.f32.mrb[0].mxu0
    %v701 = vpop.f32.mrb[0].mxu0
    %v702 = vpop.f32.mrb[0].mxu0
    %703 = vdwg.mxu0
    %v704 = vadd.f32 %v145, %v699
    %v705 = vxor.u32 %v704, 2147483648
    %v706 = vmul.f32 %v705, 1.442695
    %v707 = vpow.pop %v706
    %v708 = vadd.f32 %v707, 1.0
    %v709 = vrcp.pop %v708
    %v710 = vmul.f32 1.0, %v709
    %v711 = vmul.f32 %v710, 2.0
    %v712 = vsub.f32 %v711, 1.0
    %v713 = vsel %vm168, %v712, %v710
    %v714 = vmul.f32 %v713, %v571
    %716 = vrot.lane.b32.xlu0 %v713, 64
    %v717 = vpop.permute.xlu0 %716
    %v719 = vmul.f32 %v713, %v717
    %721 = vrot.lane.b32.xlu0 %v719, 32
    %v722 = vpop.permute.xlu0 %721
    %v724 = vadd.f32 %v714, %v722
    %v725 = vtanh.pop %v724
    %727 = vrot.lane.b32.xlu0 %v725, 64
    %v728 = vpop.permute.xlu0 %727
    %v730 = vmul.f32 %v713, %v728
    %732 = vrot.lane.b32.xlu0 %v730, 32
    %v733 = vpop.permute.xlu0 %732
    %736 = vrot.lane.b32.xlu0 %v656, 64
    %v737 = vpop.permute.xlu0 %736
    %v739 = vsel %vm86, %v733, %v737
    %v740 = vpack.c.bf16 %v739, %v739
    %v742 = vsel %vm281, %v740, 0
    %744 = vmatprep.subr.bf16.mxu0 0
    %745 = vmatpush1.bf16.msra.mxu0 %v273
    %746 = vmatprep.subr.bf16.mxu0 0
    %747 = vmatpush1.bf16.msra.mxu0 %v274
    %748 = vmatprep.subr.bf16.mxu0 0
    %749 = vmatpush1.bf16.msra.mxu0 %v275
    %750 = vmatprep.subr.bf16.mxu0 0
    %751 = vmatpush1.bf16.msra.mxu0 %v276
    %752 = vmatprep.subr.bf16.mxu0 0
    %753 = vmatpush1.bf16.msra.mxu0 0
    %754 = vmatprep.subr.bf16.mxu0 0
    %755 = vmatpush1.bf16.msra.mxu0 0
    %756 = vmatprep.subr.bf16.mxu0 0
    %757 = vmatpush1.bf16.msra.mxu0 0
    %758 = vmatprep.subr.bf16.mxu0 0
    %759 = vmatpush1.bf16.msra.mxu0 0
    %760 = vmatprep.subr.bf16.mxu0 0
    %761 = vmatpush1.bf16.msra.mxu0 0
    %762 = vmatprep.subr.bf16.mxu0 0
    %763 = vmatpush1.bf16.msra.mxu0 0
    %764 = vmatprep.subr.bf16.mxu0 0
    %765 = vmatpush1.bf16.msra.mxu0 0
    %766 = vmatprep.subr.bf16.mxu0 0
    %767 = vmatpush1.bf16.msra.mxu0 0
    %768 = vmatprep.subr.bf16.mxu0 0
    %769 = vmatpush1.bf16.msra.mxu0 0
    %770 = vmatprep.subr.bf16.mxu0 0
    %771 = vmatpush1.bf16.msra.mxu0 0
    %772 = vmatprep.subr.bf16.mxu0 0
    %773 = vmatpush1.bf16.msra.mxu0 0
    %774 = vmatprep.subr.bf16.mxu0 0
    %775 = vmatpush1.bf16.msra.mxu0 0
    %776 = vmatprep.mubr.bf16.mxu0 0
    %777 = vmatmul.mubr.bf16.gmra.mrb[0].mxu0 %v742
    %v778 = vpop.f32.mrb[0].mxu0
    %v779 = vadd.f32 %v40, %v778
    %v780 = vpop.f32.mrb[0].mxu0
    %v781 = vpop.f32.mrb[0].mxu0
    %v782 = vpop.f32.mrb[0].mxu0
    %783 = vdwg.mxu0
    %v784 = vxor.u32 %v779, 2147483648
    %v785 = vmul.f32 %v784, 1.442695
    %v786 = vpow.pop %v785
    %v787 = vadd.f32 %v786, 1.0
    %v788 = vrcp.pop %v787
    %v789 = vmul.f32 1.0, %v788
    %v790 = vmul.f32 %v789, 2.0
    %v791 = vsub.f32 %v790, 1.0
    %v792 = vsel %vm168, %v791, %v789
    %v793 = vmul.f32 %v792, %v650
    %795 = vrot.lane.b32.xlu0 %v792, 64
    %v796 = vpop.permute.xlu0 %795
    %v798 = vmul.f32 %v792, %v796
    %800 = vrot.lane.b32.xlu0 %v798, 32
    %v801 = vpop.permute.xlu0 %800
    %v803 = vadd.f32 %v793, %v801
    %v804 = vtanh.pop %v803
    %806 = vrot.lane.b32.xlu0 %v804, 64
    %v807 = vpop.permute.xlu0 %806
    %v809 = vmul.f32 %v792, %v807
    %v810 = vpack.c.bf16 %v730, %v730
    %812 = vrot.lane.b32.xlu0 %v810, 32
    %v813 = vpop.permute.xlu0 %812
    %v815 = vsel %vm86, %v813, 0
    %817 = vmatprep.subr.bf16.mxu0 0
    %818 = vmatpush1.bf16.msra.mxu0 %v177
    %819 = vmatprep.subr.bf16.mxu0 0
    %820 = vmatpush1.bf16.msra.mxu0 %v178
    %821 = vmatprep.subr.bf16.mxu0 0
    %822 = vmatpush1.bf16.msra.mxu0 0
    %823 = vmatprep.subr.bf16.mxu0 0
    %824 = vmatpush1.bf16.msra.mxu0 0
    %825 = vmatprep.subr.bf16.mxu0 0
    %826 = vmatpush1.bf16.msra.mxu0 0
    %827 = vmatprep.subr.bf16.mxu0 0
    %828 = vmatpush1.bf16.msra.mxu0 0
    %829 = vmatprep.subr.bf16.mxu0 0
    %830 = vmatpush1.bf16.msra.mxu0 0
    %831 = vmatprep.subr.bf16.mxu0 0
    %832 = vmatpush1.bf16.msra.mxu0 0
    %833 = vmatprep.subr.bf16.mxu0 0
    %834 = vmatpush1.bf16.msra.mxu0 0
    %835 = vmatprep.subr.bf16.mxu0 0
    %836 = vmatpush1.bf16.msra.mxu0 0
    %837 = vmatprep.subr.bf16.mxu0 0
    %838 = vmatpush1.bf16.msra.mxu0 0
    %839 = vmatprep.subr.bf16.mxu0 0
    %840 = vmatpush1.bf16.msra.mxu0 0
    %841 = vmatprep.subr.bf16.mxu0 0
    %842 = vmatpush1.bf16.msra.mxu0 0
    %843 = vmatprep.subr.bf16.mxu0 0
    %844 = vmatpush1.bf16.msra.mxu0 0
    %845 = vmatprep.subr.bf16.mxu0 0
    %846 = vmatpush1.bf16.msra.mxu0 0
    %847 = vmatprep.subr.bf16.mxu0 0
    %848 = vmatpush1.bf16.msra.mxu0 0
    %849 = vmatprep.mubr.bf16.mxu0 0
    %850 = vmatmul.mubr.bf16.gmra.mrb[0].mxu0 %v815
    %v851 = vpop.f32.mrb[0].mxu0
    %v852 = vadd.f32 0.0, %v851
    %v853 = vpop.f32.mrb[0].mxu0
    %v854 = vpop.f32.mrb[0].mxu0
    %v855 = vpop.f32.mrb[0].mxu0
    %856 = vdwg.mxu0
    %v857 = vadd.f32 %v150, %v852
    %v858 = vxor.u32 %v857, 2147483648
    %v859 = vmul.f32 %v858, 1.442695
    %v860 = vpow.pop %v859
    %v861 = vadd.f32 %v860, 1.0
    %v862 = vrcp.pop %v861
    %v863 = vmul.f32 1.0, %v862
    %v864 = vmul.f32 %v863, 2.0
    %v865 = vsub.f32 %v864, 1.0
    %v866 = vsel %vm168, %v865, %v863
    %v867 = vmul.f32 %v866, %v724
    %869 = vrot.lane.b32.xlu0 %v866, 64
    %v870 = vpop.permute.xlu0 %869
    %v872 = vmul.f32 %v866, %v870
    %874 = vrot.lane.b32.xlu0 %v872, 32
    %v875 = vpop.permute.xlu0 %874
    %v877 = vadd.f32 %v867, %v875
    %v878 = vtanh.pop %v877
    %880 = vrot.lane.b32.xlu0 %v878, 64
    %v881 = vpop.permute.xlu0 %880
    %v883 = vmul.f32 %v866, %v881
    %885 = vrot.lane.b32.xlu0 %v883, 32
    %v886 = vpop.permute.xlu0 %885
    %889 = vrot.lane.b32.xlu0 %v809, 64
    %v890 = vpop.permute.xlu0 %889
    %v892 = vsel %vm86, %v886, %v890
    %v893 = vpack.c.bf16 %v892, %v892
    %v895 = vsel %vm281, %v893, 0
    %897 = vmatprep.subr.bf16.mxu0 0
    %898 = vmatpush1.bf16.msra.mxu0 %v273
    %899 = vmatprep.subr.bf16.mxu0 0
    %900 = vmatpush1.bf16.msra.mxu0 %v274
    %901 = vmatprep.subr.bf16.mxu0 0
    %902 = vmatpush1.bf16.msra.mxu0 %v275
    %903 = vmatprep.subr.bf16.mxu0 0
    %904 = vmatpush1.bf16.msra.mxu0 %v276
    %905 = vmatprep.subr.bf16.mxu0 0
    %906 = vmatpush1.bf16.msra.mxu0 0
    %907 = vmatprep.subr.bf16.mxu0 0
    %908 = vmatpush1.bf16.msra.mxu0 0
    %909 = vmatprep.subr.bf16.mxu0 0
    %910 = vmatpush1.bf16.msra.mxu0 0
    %911 = vmatprep.subr.bf16.mxu0 0
    %912 = vmatpush1.bf16.msra.mxu0 0
    %913 = vmatprep.subr.bf16.mxu0 0
    %914 = vmatpush1.bf16.msra.mxu0 0
    %915 = vmatprep.subr.bf16.mxu0 0
    %916 = vmatpush1.bf16.msra.mxu0 0
    %917 = vmatprep.subr.bf16.mxu0 0
    %918 = vmatpush1.bf16.msra.mxu0 0
    %919 = vmatprep.subr.bf16.mxu0 0
    %920 = vmatpush1.bf16.msra.mxu0 0
    %921 = vmatprep.subr.bf16.mxu0 0
    %922 = vmatpush1.bf16.msra.mxu0 0
    %923 = vmatprep.subr.bf16.mxu0 0
    %924 = vmatpush1.bf16.msra.mxu0 0
    %925 = vmatprep.subr.bf16.mxu0 0
    %926 = vmatpush1.bf16.msra.mxu0 0
    %927 = vmatprep.subr.bf16.mxu0 0
    %928 = vmatpush1.bf16.msra.mxu0 0
    %929 = vmatprep.mubr.bf16.mxu0 0
    %930 = vmatmul.mubr.bf16.gmra.mrb[0].mxu0 %v895
    %v931 = vpop.f32.mrb[0].mxu0
    %v932 = vadd.f32 %v40, %v931
    %v933 = vpop.f32.mrb[0].mxu0
    %v934 = vpop.f32.mrb[0].mxu0
    %v935 = vpop.f32.mrb[0].mxu0
    %936 = vdwg.mxu0
    %v937 = vxor.u32 %v932, 2147483648
    %v938 = vmul.f32 %v937, 1.442695
    %v939 = vpow.pop %v938
    %v940 = vadd.f32 %v939, 1.0
    %v941 = vrcp.pop %v940
    %v942 = vmul.f32 1.0, %v941
    %v943 = vmul.f32 %v942, 2.0
    %v944 = vsub.f32 %v943, 1.0
    %v945 = vsel %vm168, %v944, %v942
    %v946 = vmul.f32 %v945, %v803
    %948 = vrot.lane.b32.xlu0 %v945, 64
    %v949 = vpop.permute.xlu0 %948
    %v951 = vmul.f32 %v945, %v949
    %953 = vrot.lane.b32.xlu0 %v951, 32
    %v954 = vpop.permute.xlu0 %953
    %v956 = vadd.f32 %v946, %v954
    %v957 = vtanh.pop %v956
    %959 = vrot.lane.b32.xlu0 %v957, 64
    %v960 = vpop.permute.xlu0 %959
    %v962 = vmul.f32 %v945, %v960
    %v963 = vpack.c.bf16 %v883, %v883
    %965 = vrot.lane.b32.xlu0 %v963, 32
    %v966 = vpop.permute.xlu0 %965
    %v968 = vsel %vm86, %v966, 0
    %970 = vmatprep.subr.bf16.mxu0 0
    %971 = vmatpush1.bf16.msra.mxu0 %v177
    %972 = vmatprep.subr.bf16.mxu0 0
    %973 = vmatpush1.bf16.msra.mxu0 %v178
    %974 = vmatprep.subr.bf16.mxu0 0
    %975 = vmatpush1.bf16.msra.mxu0 0
    %976 = vmatprep.subr.bf16.mxu0 0
    %977 = vmatpush1.bf16.msra.mxu0 0
    %978 = vmatprep.subr.bf16.mxu0 0
    %979 = vmatpush1.bf16.msra.mxu0 0
    %980 = vmatprep.subr.bf16.mxu0 0
    %981 = vmatpush1.bf16.msra.mxu0 0
    %982 = vmatprep.subr.bf16.mxu0 0
    %983 = vmatpush1.bf16.msra.mxu0 0
    %984 = vmatprep.subr.bf16.mxu0 0
    %985 = vmatpush1.bf16.msra.mxu0 0
    %986 = vmatprep.subr.bf16.mxu0 0
    %987 = vmatpush1.bf16.msra.mxu0 0
    %988 = vmatprep.subr.bf16.mxu0 0
    %989 = vmatpush1.bf16.msra.mxu0 0
    %990 = vmatprep.subr.bf16.mxu0 0
    %991 = vmatpush1.bf16.msra.mxu0 0
    %992 = vmatprep.subr.bf16.mxu0 0
    %993 = vmatpush1.bf16.msra.mxu0 0
    %994 = vmatprep.subr.bf16.mxu0 0
    %995 = vmatpush1.bf16.msra.mxu0 0
    %996 = vmatprep.subr.bf16.mxu0 0
    %997 = vmatpush1.bf16.msra.mxu0 0
    %998 = vmatprep.subr.bf16.mxu0 0
    %999 = vmatpush1.bf16.msra.mxu0 0
    %1000 = vmatprep.subr.bf16.mxu0 0
    %1001 = vmatpush1.bf16.msra.mxu0 0
    %1002 = vmatprep.mubr.bf16.mxu0 0
    %1003 = vmatmul.mubr.bf16.gmra.mrb[0].mxu0 %v968
    %v1004 = vpop.f32.mrb[0].mxu0
    %v1005 = vadd.f32 0.0, %v1004
    %v1006 = vpop.f32.mrb[0].mxu0
    %v1007 = vpop.f32.mrb[0].mxu0
    %v1008 = vpop.f32.mrb[0].mxu0
    %1009 = vdwg.mxu0
    %v1010 = vadd.f32 %v153, %v1005
    %v1011 = vxor.u32 %v1010, 2147483648
    %v1012 = vmul.f32 %v1011, 1.442695
    %v1013 = vpow.pop %v1012
    %v1014 = vadd.f32 %v1013, 1.0
    %v1015 = vrcp.pop %v1014
    %v1016 = vmul.f32 1.0, %v1015
    %v1017 = vmul.f32 %v1016, 2.0
    %v1018 = vsub.f32 %v1017, 1.0
    %v1019 = vsel %vm168, %v1018, %v1016
    %v1020 = vmul.f32 %v1019, %v877
    %1022 = vrot.lane.b32.xlu0 %v1019, 64
    %v1023 = vpop.permute.xlu0 %1022
    %v1025 = vmul.f32 %v1019, %v1023
    %1027 = vrot.lane.b32.xlu0 %v1025, 32
    %v1028 = vpop.permute.xlu0 %1027
    %v1030 = vadd.f32 %v1020, %v1028
    %v1031 = vtanh.pop %v1030
    %1033 = vrot.lane.b32.xlu0 %v1031, 64
    %v1034 = vpop.permute.xlu0 %1033
    %v1036 = vmul.f32 %v1019, %v1034
    %1038 = vrot.lane.b32.xlu0 %v1036, 32
    %v1039 = vpop.permute.xlu0 %1038
    %1042 = vrot.lane.b32.xlu0 %v962, 64
    %v1043 = vpop.permute.xlu0 %1042
    %v1045 = vsel %vm86, %v1039, %v1043
    %v1046 = vpack.c.bf16 %v1045, %v1045
    %v1048 = vsel %vm281, %v1046, 0
    %1050 = vmatprep.subr.bf16.mxu0 0
    %1051 = vmatpush1.bf16.msra.mxu0 %v273
    %1052 = vmatprep.subr.bf16.mxu0 0
    %1053 = vmatpush1.bf16.msra.mxu0 %v274
    %1054 = vmatprep.subr.bf16.mxu0 0
    %1055 = vmatpush1.bf16.msra.mxu0 %v275
    %1056 = vmatprep.subr.bf16.mxu0 0
    %1057 = vmatpush1.bf16.msra.mxu0 %v276
    %1058 = vmatprep.subr.bf16.mxu0 0
    %1059 = vmatpush1.bf16.msra.mxu0 0
    %1060 = vmatprep.subr.bf16.mxu0 0
    %1061 = vmatpush1.bf16.msra.mxu0 0
    %1062 = vmatprep.subr.bf16.mxu0 0
    %1063 = vmatpush1.bf16.msra.mxu0 0
    %1064 = vmatprep.subr.bf16.mxu0 0
    %1065 = vmatpush1.bf16.msra.mxu0 0
    %1066 = vmatprep.subr.bf16.mxu0 0
    %1067 = vmatpush1.bf16.msra.mxu0 0
    %1068 = vmatprep.subr.bf16.mxu0 0
    %1069 = vmatpush1.bf16.msra.mxu0 0
    %1070 = vmatprep.subr.bf16.mxu0 0
    %1071 = vmatpush1.bf16.msra.mxu0 0
    %1072 = vmatprep.subr.bf16.mxu0 0
    %1073 = vmatpush1.bf16.msra.mxu0 0
    %1074 = vmatprep.subr.bf16.mxu0 0
    %1075 = vmatpush1.bf16.msra.mxu0 0
    %1076 = vmatprep.subr.bf16.mxu0 0
    %1077 = vmatpush1.bf16.msra.mxu0 0
    %1078 = vmatprep.subr.bf16.mxu0 0
    %1079 = vmatpush1.bf16.msra.mxu0 0
    %1080 = vmatprep.subr.bf16.mxu0 0
    %1081 = vmatpush1.bf16.msra.mxu0 0
    %1082 = vmatprep.mubr.bf16.mxu0 0
    %1083 = vmatmul.mubr.bf16.gmra.mrb[0].mxu0 %v1048
    %v1084 = vpop.f32.mrb[0].mxu0
    %v1085 = vadd.f32 %v40, %v1084
    %v1086 = vpop.f32.mrb[0].mxu0
    %v1087 = vpop.f32.mrb[0].mxu0
    %v1088 = vpop.f32.mrb[0].mxu0
    %1089 = vdwg.mxu0
    %v1090 = vxor.u32 %v1085, 2147483648
    %v1091 = vmul.f32 %v1090, 1.442695
    %v1092 = vpow.pop %v1091
    %v1093 = vadd.f32 %v1092, 1.0
    %v1094 = vrcp.pop %v1093
    %v1095 = vmul.f32 1.0, %v1094
    %v1096 = vmul.f32 %v1095, 2.0
    %v1097 = vsub.f32 %v1096, 1.0
    %v1098 = vsel %vm168, %v1097, %v1095
    %v1099 = vmul.f32 %v1098, %v956
    %1101 = vrot.lane.b32.xlu0 %v1098, 64
    %v1102 = vpop.permute.xlu0 %1101
    %v1104 = vmul.f32 %v1098, %v1102
    %1106 = vrot.lane.b32.xlu0 %v1104, 32
    %v1107 = vpop.permute.xlu0 %1106
    %v1109 = vadd.f32 %v1099, %v1107
    %v1110 = vtanh.pop %v1109
    %1112 = vrot.lane.b32.xlu0 %v1110, 64
    %v1113 = vpop.permute.xlu0 %1112
    %v1115 = vmul.f32 %v1098, %v1113
    %v1116 = vpack.c.bf16 %v1036, %v1036
    %1118 = vrot.lane.b32.xlu0 %v1116, 32
    %v1119 = vpop.permute.xlu0 %1118
    %v1121 = vsel %vm86, %v1119, 0
    %1123 = vmatprep.subr.bf16.mxu0 0
    %1124 = vmatpush1.bf16.msra.mxu0 %v177
    %1125 = vmatprep.subr.bf16.mxu0 0
    %1126 = vmatpush1.bf16.msra.mxu0 %v178
    %1127 = vmatprep.subr.bf16.mxu0 0
    %1128 = vmatpush1.bf16.msra.mxu0 0
    %1129 = vmatprep.subr.bf16.mxu0 0
    %1130 = vmatpush1.bf16.msra.mxu0 0
    %1131 = vmatprep.subr.bf16.mxu0 0
    %1132 = vmatpush1.bf16.msra.mxu0 0
    %1133 = vmatprep.subr.bf16.mxu0 0
    %1134 = vmatpush1.bf16.msra.mxu0 0
    %1135 = vmatprep.subr.bf16.mxu0 0
    %1136 = vmatpush1.bf16.msra.mxu0 0
    %1137 = vmatprep.subr.bf16.mxu0 0
    %1138 = vmatpush1.bf16.msra.mxu0 0
    %1139 = vmatprep.subr.bf16.mxu0 0
    %1140 = vmatpush1.bf16.msra.mxu0 0
    %1141 = vmatprep.subr.bf16.mxu0 0
    %1142 = vmatpush1.bf16.msra.mxu0 0
    %1143 = vmatprep.subr.bf16.mxu0 0
    %1144 = vmatpush1.bf16.msra.mxu0 0
    %1145 = vmatprep.subr.bf16.mxu0 0
    %1146 = vmatpush1.bf16.msra.mxu0 0
    %1147 = vmatprep.subr.bf16.mxu0 0
    %1148 = vmatpush1.bf16.msra.mxu0 0
    %1149 = vmatprep.subr.bf16.mxu0 0
    %1150 = vmatpush1.bf16.msra.mxu0 0
    %1151 = vmatprep.subr.bf16.mxu0 0
    %1152 = vmatpush1.bf16.msra.mxu0 0
    %1153 = vmatprep.subr.bf16.mxu0 0
    %1154 = vmatpush1.bf16.msra.mxu0 0
    %1155 = vmatprep.mubr.bf16.mxu0 0
    %1156 = vmatmul.mubr.bf16.gmra.mrb[0].mxu0 %v1121
    %v1157 = vpop.f32.mrb[0].mxu0
    %v1158 = vadd.f32 0.0, %v1157
    %v1159 = vpop.f32.mrb[0].mxu0
    %v1160 = vpop.f32.mrb[0].mxu0
    %v1161 = vpop.f32.mrb[0].mxu0
    %1162 = vdwg.mxu0
    %v1163 = vadd.f32 %v158, %v1158
    %v1164 = vxor.u32 %v1163, 2147483648
    %v1165 = vmul.f32 %v1164, 1.442695
    %v1166 = vpow.pop %v1165
    %v1167 = vadd.f32 %v1166, 1.0
    %v1168 = vrcp.pop %v1167
    %v1169 = vmul.f32 1.0, %v1168
    %v1170 = vmul.f32 %v1169, 2.0
    %v1171 = vsub.f32 %v1170, 1.0
    %v1172 = vsel %vm168, %v1171, %v1169
    %v1173 = vmul.f32 %v1172, %v1030
    %1175 = vrot.lane.b32.xlu0 %v1172, 64
    %v1176 = vpop.permute.xlu0 %1175
    %v1178 = vmul.f32 %v1172, %v1176
    %1180 = vrot.lane.b32.xlu0 %v1178, 32
    %v1181 = vpop.permute.xlu0 %1180
    %v1183 = vadd.f32 %v1173, %v1181
    %v1184 = vtanh.pop %v1183
    %1186 = vrot.lane.b32.xlu0 %v1184, 64
    %v1187 = vpop.permute.xlu0 %1186
    %v1189 = vmul.f32 %v1172, %v1187
    %1191 = vrot.lane.b32.xlu0 %v1189, 32
    %v1192 = vpop.permute.xlu0 %1191
    %1195 = vrot.lane.b32.xlu0 %v1115, 64
    %v1196 = vpop.permute.xlu0 %1195
    %v1198 = vsel %vm86, %v1192, %v1196
    %v1199 = vpack.c.bf16 %v1198, %v1198
    %v1201 = vsel %vm281, %v1199, 0
    %1203 = vmatprep.subr.bf16.mxu0 0
    %1204 = vmatpush1.bf16.msra.mxu0 %v273
    %1205 = vmatprep.subr.bf16.mxu0 0
    %1206 = vmatpush1.bf16.msra.mxu0 %v274
    %1207 = vmatprep.subr.bf16.mxu0 0
    %1208 = vmatpush1.bf16.msra.mxu0 %v275
    %1209 = vmatprep.subr.bf16.mxu0 0
    %1210 = vmatpush1.bf16.msra.mxu0 %v276
    %1211 = vmatprep.subr.bf16.mxu0 0
    %1212 = vmatpush1.bf16.msra.mxu0 0
    %1213 = vmatprep.subr.bf16.mxu0 0
    %1214 = vmatpush1.bf16.msra.mxu0 0
    %1215 = vmatprep.subr.bf16.mxu0 0
    %1216 = vmatpush1.bf16.msra.mxu0 0
    %1217 = vmatprep.subr.bf16.mxu0 0
    %1218 = vmatpush1.bf16.msra.mxu0 0
    %1219 = vmatprep.subr.bf16.mxu0 0
    %1220 = vmatpush1.bf16.msra.mxu0 0
    %1221 = vmatprep.subr.bf16.mxu0 0
    %1222 = vmatpush1.bf16.msra.mxu0 0
    %1223 = vmatprep.subr.bf16.mxu0 0
    %1224 = vmatpush1.bf16.msra.mxu0 0
    %1225 = vmatprep.subr.bf16.mxu0 0
    %1226 = vmatpush1.bf16.msra.mxu0 0
    %1227 = vmatprep.subr.bf16.mxu0 0
    %1228 = vmatpush1.bf16.msra.mxu0 0
    %1229 = vmatprep.subr.bf16.mxu0 0
    %1230 = vmatpush1.bf16.msra.mxu0 0
    %1231 = vmatprep.subr.bf16.mxu0 0
    %1232 = vmatpush1.bf16.msra.mxu0 0
    %1233 = vmatprep.subr.bf16.mxu0 0
    %1234 = vmatpush1.bf16.msra.mxu0 0
    %1235 = vmatprep.mubr.bf16.mxu0 0
    %1236 = vmatmul.mubr.bf16.gmra.mrb[0].mxu0 %v1201
    %v1237 = vpop.f32.mrb[0].mxu0
    %v1238 = vadd.f32 %v40, %v1237
    %v1239 = vpop.f32.mrb[0].mxu0
    %v1240 = vpop.f32.mrb[0].mxu0
    %v1241 = vpop.f32.mrb[0].mxu0
    %1242 = vdwg.mxu0
    %v1243 = vxor.u32 %v1238, 2147483648
    %v1244 = vmul.f32 %v1243, 1.442695
    %v1245 = vpow.pop %v1244
    %v1246 = vadd.f32 %v1245, 1.0
    %v1247 = vrcp.pop %v1246
    %v1248 = vmul.f32 1.0, %v1247
    %v1249 = vmul.f32 %v1248, 2.0
    %v1250 = vsub.f32 %v1249, 1.0
    %v1251 = vsel %vm168, %v1250, %v1248
    %v1252 = vmul.f32 %v1251, %v1109
    %1254 = vrot.lane.b32.xlu0 %v1251, 64
    %v1255 = vpop.permute.xlu0 %1254
    %v1257 = vmul.f32 %v1251, %v1255
    %1259 = vrot.lane.b32.xlu0 %v1257, 32
    %v1260 = vpop.permute.xlu0 %1259
    %v1262 = vadd.f32 %v1252, %v1260
    %v1263 = vtanh.pop %v1262
    %1265 = vrot.lane.b32.xlu0 %v1263, 64
    %v1266 = vpop.permute.xlu0 %1265
    %v1268 = vmul.f32 %v1251, %v1266
    %v1269 = vpack.c.bf16 %v1189, %v1189
    %1271 = vrot.lane.b32.xlu0 %v1269, 32
    %v1272 = vpop.permute.xlu0 %1271
    %v1274 = vsel %vm86, %v1272, 0
    %1276 = vmatprep.subr.bf16.mxu0 0
    %1277 = vmatpush1.bf16.msra.mxu0 %v177
    %1278 = vmatprep.subr.bf16.mxu0 0
    %1279 = vmatpush1.bf16.msra.mxu0 %v178
    %1280 = vmatprep.subr.bf16.mxu0 0
    %1281 = vmatpush1.bf16.msra.mxu0 0
    %1282 = vmatprep.subr.bf16.mxu0 0
    %1283 = vmatpush1.bf16.msra.mxu0 0
    %1284 = vmatprep.subr.bf16.mxu0 0
    %1285 = vmatpush1.bf16.msra.mxu0 0
    %1286 = vmatprep.subr.bf16.mxu0 0
    %1287 = vmatpush1.bf16.msra.mxu0 0
    %1288 = vmatprep.subr.bf16.mxu0 0
    %1289 = vmatpush1.bf16.msra.mxu0 0
    %1290 = vmatprep.subr.bf16.mxu0 0
    %1291 = vmatpush1.bf16.msra.mxu0 0
    %1292 = vmatprep.subr.bf16.mxu0 0
    %1293 = vmatpush1.bf16.msra.mxu0 0
    %1294 = vmatprep.subr.bf16.mxu0 0
    %1295 = vmatpush1.bf16.msra.mxu0 0
    %1296 = vmatprep.subr.bf16.mxu0 0
    %1297 = vmatpush1.bf16.msra.mxu0 0
    %1298 = vmatprep.subr.bf16.mxu0 0
    %1299 = vmatpush1.bf16.msra.mxu0 0
    %1300 = vmatprep.subr.bf16.mxu0 0
    %1301 = vmatpush1.bf16.msra.mxu0 0
    %1302 = vmatprep.subr.bf16.mxu0 0
    %1303 = vmatpush1.bf16.msra.mxu0 0
    %1304 = vmatprep.subr.bf16.mxu0 0
    %1305 = vmatpush1.bf16.msra.mxu0 0
    %1306 = vmatprep.subr.bf16.mxu0 0
    %1307 = vmatpush1.bf16.msra.mxu0 0
    %1308 = vmatprep.mubr.bf16.mxu0 0
    %1309 = vmatmul.mubr.bf16.gmra.mrb[0].mxu0 %v1274
    %v1310 = vpop.f32.mrb[0].mxu0
    %v1311 = vadd.f32 0.0, %v1310
    %v1312 = vpop.f32.mrb[0].mxu0
    %v1313 = vpop.f32.mrb[0].mxu0
    %v1314 = vpop.f32.mrb[0].mxu0
    %1315 = vdwg.mxu0
    %v1316 = vadd.f32 %v161, %v1311
    %v1317 = vxor.u32 %v1316, 2147483648
    %v1318 = vmul.f32 %v1317, 1.442695
    %v1319 = vpow.pop %v1318
    %v1320 = vadd.f32 %v1319, 1.0
    %v1321 = vrcp.pop %v1320
    %v1322 = vmul.f32 1.0, %v1321
    %v1323 = vmul.f32 %v1322, 2.0
    %v1324 = vsub.f32 %v1323, 1.0
    %v1325 = vsel %vm168, %v1324, %v1322
    %v1326 = vmul.f32 %v1325, %v1183
    %1328 = vrot.lane.b32.xlu0 %v1325, 64
    %v1329 = vpop.permute.xlu0 %1328
    %v1331 = vmul.f32 %v1325, %v1329
    %1333 = vrot.lane.b32.xlu0 %v1331, 32
    %v1334 = vpop.permute.xlu0 %1333
    %v1336 = vadd.f32 %v1326, %v1334
    %v1337 = vtanh.pop %v1336
    %1339 = vrot.lane.b32.xlu0 %v1337, 64
    %v1340 = vpop.permute.xlu0 %1339
    %v1342 = vmul.f32 %v1325, %v1340
    %1344 = vrot.lane.b32.xlu0 %v1342, 32
    %v1345 = vpop.permute.xlu0 %1344
    %1348 = vrot.lane.b32.xlu0 %v1268, 64
    %v1349 = vpop.permute.xlu0 %1348
    %v1351 = vsel %vm86, %v1345, %v1349
    %v1352 = vpack.c.bf16 %v1351, %v1351
    %v1354 = vsel %vm281, %v1352, 0
    %1356 = vmatprep.subr.bf16.mxu0 0
    %1357 = vmatpush1.bf16.msra.mxu0 %v273
    %1358 = vmatprep.subr.bf16.mxu0 0
    %1359 = vmatpush1.bf16.msra.mxu0 %v274
    %1360 = vmatprep.subr.bf16.mxu0 0
    %1361 = vmatpush1.bf16.msra.mxu0 %v275
    %1362 = vmatprep.subr.bf16.mxu0 0
    %1363 = vmatpush1.bf16.msra.mxu0 %v276
    %1364 = vmatprep.subr.bf16.mxu0 0
    %1365 = vmatpush1.bf16.msra.mxu0 0
    %1366 = vmatprep.subr.bf16.mxu0 0
    %1367 = vmatpush1.bf16.msra.mxu0 0
    %1368 = vmatprep.subr.bf16.mxu0 0
    %1369 = vmatpush1.bf16.msra.mxu0 0
    %1370 = vmatprep.subr.bf16.mxu0 0
    %1371 = vmatpush1.bf16.msra.mxu0 0
    %1372 = vmatprep.subr.bf16.mxu0 0
    %1373 = vmatpush1.bf16.msra.mxu0 0
    %1374 = vmatprep.subr.bf16.mxu0 0
    %1375 = vmatpush1.bf16.msra.mxu0 0
    %1376 = vmatprep.subr.bf16.mxu0 0
    %1377 = vmatpush1.bf16.msra.mxu0 0
    %1378 = vmatprep.subr.bf16.mxu0 0
    %1379 = vmatpush1.bf16.msra.mxu0 0
    %1380 = vmatprep.subr.bf16.mxu0 0
    %1381 = vmatpush1.bf16.msra.mxu0 0
    %1382 = vmatprep.subr.bf16.mxu0 0
    %1383 = vmatpush1.bf16.msra.mxu0 0
    %1384 = vmatprep.subr.bf16.mxu0 0
    %1385 = vmatpush1.bf16.msra.mxu0 0
    %1386 = vmatprep.subr.bf16.mxu0 0
    %1387 = vmatpush1.bf16.msra.mxu0 0
    %1388 = vmatprep.mubr.bf16.mxu0 0
    %1389 = vmatmul.mubr.bf16.gmra.mrb[0].mxu0 %v1354
    %v1390 = vpop.f32.mrb[0].mxu0
    %v1391 = vadd.f32 %v40, %v1390
    %v1392 = vpop.f32.mrb[0].mxu0
    %v1393 = vpop.f32.mrb[0].mxu0
    %v1394 = vpop.f32.mrb[0].mxu0
    %1395 = vdwg.mxu0
    %v1396 = vxor.u32 %v1391, 2147483648
    %v1397 = vmul.f32 %v1396, 1.442695
    %v1398 = vpow.pop %v1397
    %v1399 = vadd.f32 %v1398, 1.0
    %v1400 = vrcp.pop %v1399
    %v1401 = vmul.f32 1.0, %v1400
    %v1402 = vmul.f32 %v1401, 2.0
    %v1403 = vsub.f32 %v1402, 1.0
    %v1404 = vsel %vm168, %v1403, %v1401
    %v1405 = vmul.f32 %v1404, %v1262
    %1407 = vrot.lane.b32.xlu0 %v1404, 64
    %v1408 = vpop.permute.xlu0 %1407
    %v1410 = vmul.f32 %v1404, %v1408
    %1412 = vrot.lane.b32.xlu0 %v1410, 32
    %v1413 = vpop.permute.xlu0 %1412
    %v1415 = vadd.f32 %v1405, %v1413
    %v1416 = vtanh.pop %v1415
    %1418 = vrot.lane.b32.xlu0 %v1416, 64
    %v1419 = vpop.permute.xlu0 %1418
    %v1421 = vmul.f32 %v1404, %v1419
    %v1422 = vld [vmem:[%s3] sm:$0xff]
    %v1423 = vld [vmem:[%s3 + $0x8] sm:$0xff]
    %v1424 = vld [vmem:[%s3 + $0x10] sm:$0xff]
    %v1425 = vld [vmem:[%s3 + $0x18] sm:$0xff]
    %v1426 = vlaneseq
    %v1427 = vshrl.u32 %v1426, 7
    %v1428 = vsub.s32 0, %v1427
    %v1429 = vrot.slane %v41, %v1428
    %1431 = vrot.lane.b32.xlu0 %v1421, 32
    %v1432 = vpop.permute.xlu0 %1431
    %v1433 = vsel %vm86, %v1432, 0
    %1435 = vmatprep.subr.mxu0 0.0
    %1436 = vmatpush1.msra.mxu0 %v1422
    %1437 = vmatprep.subr.mxu0 0.0
    %1438 = vmatpush1.msra.mxu0 %v1423
    %1439 = vmatprep.subr.mxu0 0.0
    %1440 = vmatpush1.msra.mxu0 %v1424
    %1441 = vmatprep.subr.mxu0 0.0
    %1442 = vmatpush1.msra.mxu0 %v1425
    %1443 = vmatprep.subr.mxu0 0.0
    %1444 = vmatpush1.msra.mxu0 0.0
    %1445 = vmatprep.subr.mxu0 0.0
    %1446 = vmatpush1.msra.mxu0 0.0
    %1447 = vmatprep.subr.mxu0 0.0
    %1448 = vmatpush1.msra.mxu0 0.0
    %1449 = vmatprep.subr.mxu0 0.0
    %1450 = vmatpush1.msra.mxu0 0.0
    %1451 = vmatprep.subr.mxu0 0.0
    %1452 = vmatpush1.msra.mxu0 0.0
    %1453 = vmatprep.subr.mxu0 0.0
    %1454 = vmatpush1.msra.mxu0 0.0
    %1455 = vmatprep.subr.mxu0 0.0
    %1456 = vmatpush1.msra.mxu0 0.0
    %1457 = vmatprep.subr.mxu0 0.0
    %1458 = vmatpush1.msra.mxu0 0.0
    %1459 = vmatprep.subr.mxu0 0.0
    %1460 = vmatpush1.msra.mxu0 0.0
    %1461 = vmatprep.subr.mxu0 0.0
    %1462 = vmatpush1.msra.mxu0 0.0
    %1463 = vmatprep.subr.mxu0 0.0
    %1464 = vmatpush1.msra.mxu0 0.0
    %1465 = vmatprep.subr.mxu0 0.0
    %1466 = vmatpush1.msra.mxu0 0.0
    %1467 = vmatprep.subr.mxu0 0.0
    %1468 = vmatpush1.msra.mxu0 0.0
    %1469 = vmatprep.subr.mxu0 0.0
    %1470 = vmatpush1.msra.mxu0 0.0
    %1471 = vmatprep.subr.mxu0 0.0
    %1472 = vmatpush1.msra.mxu0 0.0
    %1473 = vmatprep.subr.mxu0 0.0
    %1474 = vmatpush1.msra.mxu0 0.0
    %1475 = vmatprep.subr.mxu0 0.0
    %1476 = vmatpush1.msra.mxu0 0.0
    %1477 = vmatprep.subr.mxu0 0.0
    %1478 = vmatpush1.msra.mxu0 0.0
    %1479 = vmatprep.subr.mxu0 0.0
    %1480 = vmatpush1.msra.mxu0 0.0
    %1481 = vmatprep.subr.mxu0 0.0
    %1482 = vmatpush1.msra.mxu0 0.0
    %1483 = vmatprep.subr.mxu0 0.0
    %1484 = vmatpush1.msra.mxu0 0.0
    %1485 = vmatprep.subr.mxu0 0.0
    %1486 = vmatpush1.msra.mxu0 0.0
    %1487 = vmatprep.subr.mxu0 0.0
    %1488 = vmatpush1.msra.mxu0 0.0
    %1489 = vmatprep.subr.mxu0 0.0
    %1490 = vmatpush1.msra.mxu0 0.0
    %1491 = vmatprep.subr.mxu0 0.0
    %1492 = vmatpush1.msra.mxu0 0.0
    %1493 = vmatprep.subr.mxu0 0.0
    %1494 = vmatpush1.msra.mxu0 0.0
    %1495 = vmatprep.subr.mxu0 0.0
    %1496 = vmatpush1.msra.mxu0 0.0
    %1497 = vmatprep.subr.mxu0 0.0
    %1498 = vmatpush1.msra.mxu0 0.0
    %1499 = vmatprep.mubr.f32.mxu0 0.0
    %1500 = vmatmul.mubr.f32.gmra.mrb[0].mxu0 %v1433
    %v1501 = vpop.f32.mrb[0].mxu0
    %v1502 = vadd.f32 %v1429, %v1501
    %v1503 = vpop.f32.mrb[0].mxu0
    %1504 = vdwg.mxu0
    %vm1505 = vcmask 72704
    %1506 = vst.msk [vmem:[#allocation2] sm:$0xff] %vm1505, %v1502
    // Predicated region
    $region18: #{tpu_custom_call.1} parent=1 // pred_check
      _
    $region19: #{tpu_custom_call.1} parent=1 // pred_check_branch
      %1508 = sbr.rel (0) target = $region21
    $region20: #{tpu_custom_call.1} parent=1 // pred_region
      %s1510 = ssub.s32 128, 128
      %1511 = vsyncadd [#allocation3], %s1510
      %s1513 = sshll.u32 [#allocation2], 4
      %s1514 = int_to_ptr.vmem [resolvable:$true] %s1513
      %1516 = dma.vmem_to_hbm [thread:$0]  %s1514, 128, %s4, [#allocation3]
    $region21: #{tpu_custom_call.1} parent=1 // pred_fallthru
      _
    // Predicated region
    $region22: #{tpu_custom_call.1} parent=1 // pred_check
      _
    $region23: #{tpu_custom_call.1} parent=1 // pred_check_branch
      %1518 = sbr.rel (0) target = $region25
    $region24: #{tpu_custom_call.1} parent=1 // pred_region
      %1519 = dma.done [#allocation3], 128
    $region25: #{tpu_custom_call.1} parent=1 // pred_fallthru
      _
    %1520 = vsyncpa [#allocation3], 1

</llo_original>
